<compile_context>
chip_gen: v7x
topology: tpu7x:2x2x1
jax: 0.10.0
libtpu: 0.0.40
codegen_flags: <defaults>
</compile_context>

<pallas_src>
import math

import jax
import jax.numpy as jnp
from jax.experimental import pallas as pl
from jax.experimental.pallas import tpu as pltpu


def _downsample_kernel(body_ref, halo_ref, wm_ref, wd_ref, b_ref, o_ref):
    # body_ref: (1, toh, OW, 6C)  space-to-depth rows [r*toh, (r+1)*toh)
    # halo_ref: (1, 1,   OW, 6C)  space-to-depth row   (r+1)*toh
    # wm_ref  : (6C, Cp)          weights for taps kh in {0, 1} (all kw)
    # wd_ref  : (3C, Cp)          weights for taps kh == 2
    # b_ref   : (1, Cp)           f32 bias
    # o_ref   : (1, toh*OW, Cp)   flattened output rows of this tile
    toh, ow, c6 = body_ref.shape[1], body_ref.shape[2], body_ref.shape[3]
    c = c6 // 6
    m = toh * ow
    m_top = (toh - 1) * ow

    body = body_ref[0].reshape(m, c6)          # collapse leading dims (last dim untouched)
    halo = halo_ref[0].reshape(ow, c6)
    bias = b_ref[...]

    # Taps kh in {0,1}: a single K=6C matmul over every output row of the tile.
    acc = jnp.dot(body, wm_ref[...], preferred_element_type=jnp.float32)

    # Taps kh == 2 read the *next* space-to-depth row: body rows 1..toh-1 feed output rows
    # 0..toh-2, the halo row feeds the tile's last output row. Two disjoint stores — no
    # concatenation, no extra accumulator passes.
    bot = jnp.dot(halo[:, c:4 * c], wd_ref[...], preferred_element_type=jnp.float32)
    if toh > 1:
        top = jnp.dot(body[ow:, c:4 * c], wd_ref[...], preferred_element_type=jnp.float32)
        o_ref[0, :m_top, :] = (acc[:m_top] + top + bias).astype(o_ref.dtype)
    o_ref[0, m_top:, :] = (acc[m_top:] + bot + bias).astype(o_ref.dtype)


def _tpu_vmem_capacity():
    try:
        return int(pltpu.get_tpu_info().vmem_capacity_bytes)
    except Exception:
        return 64 << 20          # conservative default (v7x-sized), safe on all parts


def downsample(x_nchw, weight, bias, *, toh=None, compute_dtype=None):
    """Pallas TPU equivalent of Downsample.forward (3x3/stride-2 conv on (0,1,0,1)-padded x)."""
    B, C, H, W = x_nchw.shape
    Cout, Cin = weight.shape[0], weight.shape[1]
    assert Cin == C and tuple(weight.shape[2:]) == (3, 3), (weight.shape, C)
    OH = (H - 2) // 2 + 1
    OW = (W - 2) // 2 + 1
    Cp = -(-Cout // 128) * 128                      # lane-dense output channels
    cdt = jnp.dtype(compute_dtype) if compute_dtype is not None else x_nchw.dtype
    in_it = jnp.dtype(cdt).itemsize
    out_it = x_nchw.dtype.itemsize

    # ---- generation-aware tile height + VMEM budget --------------------------------
    vmem_cap = _tpu_vmem_capacity()
    per_row = OW * (2 * 6 * C * in_it               # body block (double buffered)
                    + 2 * Cp * out_it               # output block (double buffered)
                    + 2 * Cp * 4                    # f32 matmul results (main + kh==2)
                    + 3 * C * in_it                 # kh==2 operand slice copy
                    + 6 * C * in_it)                # loaded body value
    fixed = 2 * (9 * C * Cp * in_it + Cp * 4)       # weights + bias (worst case: 2 buffers)
    fixed += 2 * OW * 6 * C * in_it                 # halo block (double buffered)
    fixed += 2 << 20                                # Mosaic-internal slack
    if toh is None:
        budget = int(0.4 * vmem_cap)                # leave headroom, esp. on 64 MiB v7x
        toh = max(1, (budget - fixed) // per_row) if budget > fixed else 1
    toh = max(1, min(int(toh), OH))
    if B == 1:
        # keep >= 2 grid steps so both TensorCores of a v7x chip get work
        toh = min(toh, max(1, -(-OH // 2)))
    if toh < OH and (toh * OW) % 8 != 0:            # keep output block sublane-aligned
        req = 8 // math.gcd(OW, 8)
        toh = (toh // req) * req or OH
    toh = min(toh, OH)
    nr = -(-OH // toh)
    OHp = nr * toh
    est = fixed + toh * per_row
    vmem_limit = int(min(max(32 << 20, est + (4 << 20)), vmem_cap))

    # ---- space-to-depth relayout (rows/cols >= H/W are zero == F.pad(x,(0,1,0,1))) ---
    # TODO(synk): drop the transposes/relayout if the surrounding model carries NHWC.
    x = jnp.transpose(x_nchw, (0, 2, 3, 1)).astype(cdt)
    Hs, Ws = 2 * (OHp + 1), 2 * OW + 2
    xp = jnp.pad(x, ((0, 0), (0, Hs - H), (0, Ws - W), (0, 0)))
    ev, od = xp[:, 0::2], xp[:, 1::2]               # even / odd padded input rows
    xs = jnp.concatenate(
        [od[:, :, 0:2 * OW:2], ev[:, :, 0:2 * OW:2], ev[:, :, 1:2 * OW:2],
         ev[:, :, 2:2 * OW + 2:2], od[:, :, 1:2 * OW:2], od[:, :, 2:2 * OW + 2:2]],
        axis=-1)                                    # (B, OHp+1, OW, 6C)

    # PyTorch weight (Cout, Cin, 3, 3) -> per-tap (Cin, Cout) blocks matching the 6 groups.
    wt = jnp.transpose(weight, (2, 3, 1, 0))        # (kh, kw, Cin, Cout)
    w_main = jnp.concatenate([wt[1, 0], wt[0, 0], wt[0, 1], wt[0, 2], wt[1, 1], wt[1, 2]], 0)
    w_down = jnp.concatenate([wt[2, 0], wt[2, 1], wt[2, 2]], 0)
    b = bias.astype(jnp.float32)
    if Cp != Cout:
        w_main = jnp.pad(w_main, ((0, 0), (0, Cp - Cout)))
        w_down = jnp.pad(w_down, ((0, 0), (0, Cp - Cout)))
        b = jnp.pad(b, (0, Cp - Cout))
    w_main = w_main.astype(cdt)
    w_down = w_down.astype(cdt)
    b = b.reshape(1, Cp)

    def build(single_buffer_consts):
        def const_spec(shape):
            idx = lambda bi, r: (0,) * len(shape)
            if single_buffer_consts:
                return pl.BlockSpec(shape, idx, pipeline_mode=pl.Buffered(1))
            return pl.BlockSpec(shape, idx)

        return pl.pallas_call(
            _downsample_kernel,
            out_shape=jax.ShapeDtypeStruct((B, OHp * OW, Cp), x_nchw.dtype),
            grid_spec=pltpu.PrefetchScalarGridSpec(
                num_scalar_prefetch=0,
                grid=(B, nr),
                in_specs=[
                    # body: toh space-to-depth rows of one image
                    pl.BlockSpec((1, toh, OW, 6 * C), lambda bi, r: (bi, r, 0, 0)),
                    # halo: the single row just below the body slab (same array, 2nd spec)
                    pl.BlockSpec((1, 1, OW, 6 * C), lambda bi, r: (bi, (r + 1) * toh, 0, 0)),
                    # constant weights / bias (block index never changes)
                    const_spec((6 * C, Cp)),
                    const_spec((3 * C, Cp)),
                    const_spec((1, Cp)),
                ],
                out_specs=pl.BlockSpec((1, toh * OW, Cp), lambda bi, r: (bi, r, 0)),
            ),
            compiler_params=pltpu.CompilerParams(
                dimension_semantics=("parallel", "parallel"),
                vmem_limit_bytes=vmem_limit,
            ),
        )

    try:
        # preferred path: constants single-buffered (reclaims ~9*C*Cp bytes of VMEM)
        out = jax.block_until_ready(build(True)(xs, xs, w_main, w_down, b))
    except Exception:
        out = build(False)(xs, xs, w_main, w_down, b)

    out = out.reshape(B, OHp, OW, Cp)[:, :OH, :, :Cout]
    return jnp.transpose(out, (0, 3, 1, 2))


if __name__ == "__main__":
    key = jax.random.PRNGKey(0)
    kx, kw, kb = jax.random.split(key, 3)

    B, C, H, W = 2, 4, 16, 16
    x = jax.random.normal(kx, (B, C, H, W), dtype=jnp.float32)
    # deterministic synthetic Conv2d(in=C, out=C, k=3) parameters
    weight = jax.random.normal(kw, (C, C, 3, 3), dtype=jnp.float32) * 0.1
    bias = jax.random.normal(kb, (C,), dtype=jnp.float32) * 0.1

    # toh=4 -> grid (B=2, row_tiles=2): exercises the halo row and the multi-tile path.
    y = jax.block_until_ready(downsample(x, weight, bias, toh=4))

    # reference: XLA conv with the same asymmetric (0,1,0,1) padding
    ref = jax.lax.conv_general_dilated(
        x, weight, window_strides=(2, 2), padding=((0, 1), (0, 1)),
        dimension_numbers=("NCHW", "OIHW", "NCHW"),
    ) + bias[None, :, None, None]

    assert y.shape == (B, C, H // 2, W // 2), y.shape
    err = float(jnp.max(jnp.abs(y - ref)))
    assert jnp.allclose(y, ref, atol=1e-4, rtol=1e-4), err
    print("KERNEL_OK")
</pallas_src>

<mosaic_0001>
module attributes {stable_mosaic.version = 11 : i64} {
  func.func @_downsample_kernel(%arg0: i32, %arg1: i32, %arg2: memref<1x4x8x24xf32, #tpu.memory_space<vmem>>, %arg3: memref<1x1x8x24xf32, #tpu.memory_space<vmem>>, %arg4: memref<24x128xf32, #tpu.memory_space<vmem>>, %arg5: memref<12x128xf32, #tpu.memory_space<vmem>>, %arg6: memref<1x128xf32, #tpu.memory_space<vmem>>, %arg7: memref<1x32x128xf32, #tpu.memory_space<vmem>>) attributes {dimension_semantics = [#tpu.dimension_semantics<parallel>, #tpu.dimension_semantics<parallel>], iteration_bounds = array<i64: 2, 2>, scalar_prefetch = 0 : i64, scratch_operands = 0 : i64, tpu.core_type = #tpu.core_type<tc>, window_params = [{transform_indices = @transform_0, window_bounds = array<i64: 1, 4, 8, 24>}, {transform_indices = @transform_1, window_bounds = array<i64: 1, 1, 8, 24>}, {pipeline_mode = #tpu.pipeline_mode<synchronous>, transform_indices = @transform_2, window_bounds = array<i64: 24, 128>}, {pipeline_mode = #tpu.pipeline_mode<synchronous>, transform_indices = @transform_3, window_bounds = array<i64: 12, 128>}, {pipeline_mode = #tpu.pipeline_mode<synchronous>, transform_indices = @transform_4, window_bounds = array<i64: 1, 128>}, {transform_indices = @transform_5, window_bounds = array<i64: 1, 32, 128>}]} {
    %c0 = arith.constant 0 : index
    %c0_0 = arith.constant 0 : index
    %c0_1 = arith.constant 0 : index
    %c0_2 = arith.constant 0 : index
    %0 = vector.load %arg2[%c0, %c0_0, %c0_1, %c0_2] : memref<1x4x8x24xf32, #tpu.memory_space<vmem>>, vector<1x4x8x24xf32>
    %1 = vector.shape_cast %0 : vector<1x4x8x24xf32> to vector<4x8x24xf32>
    %2 = vector.shape_cast %1 : vector<4x8x24xf32> to vector<32x24xf32>
    %c0_3 = arith.constant 0 : index
    %c0_4 = arith.constant 0 : index
    %c0_5 = arith.constant 0 : index
    %c0_6 = arith.constant 0 : index
    %3 = vector.load %arg3[%c0_3, %c0_4, %c0_5, %c0_6] : memref<1x1x8x24xf32, #tpu.memory_space<vmem>>, vector<1x1x8x24xf32>
    %4 = vector.shape_cast %3 : vector<1x1x8x24xf32> to vector<1x8x24xf32>
    %5 = vector.shape_cast %4 : vector<1x8x24xf32> to vector<8x24xf32>
    %c0_7 = arith.constant 0 : index
    %c0_8 = arith.constant 0 : index
    %6 = vector.load %arg6[%c0_7, %c0_8] : memref<1x128xf32, #tpu.memory_space<vmem>>, vector<1x128xf32>
    %c0_9 = arith.constant 0 : index
    %c0_10 = arith.constant 0 : index
    %7 = vector.load %arg4[%c0_9, %c0_10] : memref<24x128xf32, #tpu.memory_space<vmem>>, vector<24x128xf32>
    %cst = arith.constant dense<0.000000e+00> : vector<32x128xf32>
    %8 = tpu.matmul %2, %7, %cst {dimension_numbers = #tpu.dot_dimension_numbers<[1], [0], [0], [1], [0, 0, 1, 1], [], []>} : vector<32x24xf32>, vector<24x128xf32>, vector<32x128xf32> -> vector<32x128xf32>
    %9 = vector.extract_strided_slice %5 {offsets = [0, 4], sizes = [8, 12], strides = [1, 1]} : vector<8x24xf32> to vector<8x12xf32>
    %c0_11 = arith.constant 0 : index
    %c0_12 = arith.constant 0 : index
    %10 = vector.load %arg5[%c0_11, %c0_12] : memref<12x128xf32, #tpu.memory_space<vmem>>, vector<12x128xf32>
    %cst_13 = arith.constant dense<0.000000e+00> : vector<8x128xf32>
    %11 = tpu.matmul %9, %10, %cst_13 {dimension_numbers = #tpu.dot_dimension_numbers<[1], [0], [0], [1], [0, 0, 1, 1], [], []>} : vector<8x12xf32>, vector<12x128xf32>, vector<8x128xf32> -> vector<8x128xf32>
    %12 = vector.extract_strided_slice %2 {offsets = [8, 4], sizes = [24, 12], strides = [1, 1]} : vector<32x24xf32> to vector<24x12xf32>
    %c0_14 = arith.constant 0 : index
    %c0_15 = arith.constant 0 : index
    %13 = vector.load %arg5[%c0_14, %c0_15] : memref<12x128xf32, #tpu.memory_space<vmem>>, vector<12x128xf32>
    %cst_16 = arith.constant dense<0.000000e+00> : vector<24x128xf32>
    %14 = tpu.matmul %12, %13, %cst_16 {dimension_numbers = #tpu.dot_dimension_numbers<[1], [0], [0], [1], [0, 0, 1, 1], [], []>} : vector<24x12xf32>, vector<12x128xf32>, vector<24x128xf32> -> vector<24x128xf32>
    %15 = vector.extract_strided_slice %8 {offsets = [0, 0], sizes = [24, 128], strides = [1, 1]} : vector<32x128xf32> to vector<24x128xf32>
    %16 = arith.addf %15, %14 : vector<24x128xf32>
    %17 = vector.broadcast %6 : vector<1x128xf32> to vector<24x128xf32>
    %18 = arith.addf %16, %17 : vector<24x128xf32>
    %c0_17 = arith.constant 0 : index
    %c0_18 = arith.constant 0 : index
    %c0_19 = arith.constant 0 : index
    %19 = vector.load %arg7[%c0_17, %c0_18, %c0_19] : memref<1x32x128xf32, #tpu.memory_space<vmem>>, vector<1x24x128xf32>
    %20 = vector.shape_cast %19 : vector<1x24x128xf32> to vector<24x128xf32>
    %21 = vector.shape_cast %18 : vector<24x128xf32> to vector<1x24x128xf32>
    tpu.vector_store %arg7[%c0_17, %c0_18, %c0_19], %21 {strides = array<i32>} : memref<1x32x128xf32, #tpu.memory_space<vmem>>, vector<1x24x128xf32>,
    %22 = vector.extract_strided_slice %8 {offsets = [24, 0], sizes = [8, 128], strides = [1, 1]} : vector<32x128xf32> to vector<8x128xf32>
    %23 = arith.addf %22, %11 : vector<8x128xf32>
    %24 = vector.broadcast %6 : vector<1x128xf32> to vector<8x128xf32>
    %25 = arith.addf %23, %24 : vector<8x128xf32>
    %c0_20 = arith.constant 0 : index
    %c24 = arith.constant 24 : index
    %c0_21 = arith.constant 0 : index
    %26 = vector.load %arg7[%c0_20, %c24, %c0_21] : memref<1x32x128xf32, #tpu.memory_space<vmem>>, vector<1x8x128xf32>
    %27 = vector.shape_cast %26 : vector<1x8x128xf32> to vector<8x128xf32>
    %28 = vector.shape_cast %25 : vector<8x128xf32> to vector<1x8x128xf32>
    tpu.vector_store %arg7[%c0_20, %c24, %c0_21], %28 {strides = array<i32>} : memref<1x32x128xf32, #tpu.memory_space<vmem>>, vector<1x8x128xf32>,
    return
  }
  func.func @transform_0(%arg0: i32, %arg1: i32) -> (i32, i32, i32, i32) {
    %c0_i32 = arith.constant 0 : i32
    %c0_i32_0 = arith.constant 0 : i32
    %c0_i32_1 = arith.constant 0 : i32
    return %arg0, %arg1, %c0_i32, %c0_i32_0 : i32, i32, i32, i32
  }
  func.func @transform_1(%arg0: i32, %arg1: i32) -> (i32, i32, i32, i32) {
    %c1_i32 = arith.constant 1 : i32
    %0 = arith.addi %arg1, %c1_i32 : i32
    %c4_i32 = arith.constant 4 : i32
    %1 = arith.muli %0, %c4_i32 : i32
    %c0_i32 = arith.constant 0 : i32
    %c0_i32_0 = arith.constant 0 : i32
    %c0_i32_1 = arith.constant 0 : i32
    return %arg0, %1, %c0_i32, %c0_i32_0 : i32, i32, i32, i32
  }
  func.func @transform_2(%arg0: i32, %arg1: i32) -> (i32, i32) {
    %c0_i32 = arith.constant 0 : i32
    %c0_i32_0 = arith.constant 0 : i32
    %c0_i32_1 = arith.constant 0 : i32
    return %c0_i32, %c0_i32_0 : i32, i32
  }
  func.func @transform_3(%arg0: i32, %arg1: i32) -> (i32, i32) {
    %c0_i32 = arith.constant 0 : i32
    %c0_i32_0 = arith.constant 0 : i32
    %c0_i32_1 = arith.constant 0 : i32
    return %c0_i32, %c0_i32_0 : i32, i32
  }
  func.func @transform_4(%arg0: i32, %arg1: i32) -> (i32, i32) {
    %c0_i32 = arith.constant 0 : i32
    %c0_i32_0 = arith.constant 0 : i32
    %c0_i32_1 = arith.constant 0 : i32
    return %c0_i32, %c0_i32_0 : i32, i32
  }
  func.func @transform_5(%arg0: i32, %arg1: i32) -> (i32, i32, i32) {
    %c0_i32 = arith.constant 0 : i32
    %c0_i32_0 = arith.constant 0 : i32
    return %arg0, %arg1, %c0_i32 : i32, i32, i32
  }
}

module attributes {stable_mosaic.version = 11 : i64} {
  func.func @_downsample_kernel(%arg0: i32, %arg1: i32, %arg2: memref<1x4x8x24xf32, #tpu.memory_space<vmem>>, %arg3: memref<1x1x8x24xf32, #tpu.memory_space<vmem>>, %arg4: memref<24x128xf32, #tpu.memory_space<vmem>>, %arg5: memref<12x128xf32, #tpu.memory_space<vmem>>, %arg6: memref<1x128xf32, #tpu.memory_space<vmem>>, %arg7: memref<1x32x128xf32, #tpu.memory_space<vmem>>) attributes {dimension_semantics = [#tpu.dimension_semantics<parallel>, #tpu.dimension_semantics<parallel>], iteration_bounds = array<i64: 2, 2>, scalar_prefetch = 0 : i64, scratch_operands = 0 : i64, tpu.core_type = #tpu.core_type<tc>, window_params = [{transform_indices = @transform_0, window_bounds = array<i64: 1, 4, 8, 24>}, {transform_indices = @transform_1, window_bounds = array<i64: 1, 1, 8, 24>}, {pipeline_mode = #tpu.pipeline_mode<synchronous>, transform_indices = @transform_2, window_bounds = array<i64: 24, 128>}, {pipeline_mode = #tpu.pipeline_mode<synchronous>, transform_indices = @transform_3, window_bounds = array<i64: 12, 128>}, {pipeline_mode = #tpu.pipeline_mode<synchronous>, transform_indices = @transform_4, window_bounds = array<i64: 1, 128>}, {transform_indices = @transform_5, window_bounds = array<i64: 1, 32, 128>}]} {
    %c0 = arith.constant 0 : index
    %c0_0 = arith.constant 0 : index
    %c0_1 = arith.constant 0 : index
    %c0_2 = arith.constant 0 : index
    %0 = vector.load %arg2[%c0, %c0_0, %c0_1, %c0_2] : memref<1x4x8x24xf32, #tpu.memory_space<vmem>>, vector<1x4x8x24xf32>
    %1 = vector.shape_cast %0 : vector<1x4x8x24xf32> to vector<4x8x24xf32>
    %2 = vector.shape_cast %1 : vector<4x8x24xf32> to vector<32x24xf32>
    %c0_3 = arith.constant 0 : index
    %c0_4 = arith.constant 0 : index
    %c0_5 = arith.constant 0 : index
    %c0_6 = arith.constant 0 : index
    %3 = vector.load %arg3[%c0_3, %c0_4, %c0_5, %c0_6] : memref<1x1x8x24xf32, #tpu.memory_space<vmem>>, vector<1x1x8x24xf32>
    %4 = vector.shape_cast %3 : vector<1x1x8x24xf32> to vector<1x8x24xf32>
    %5 = vector.shape_cast %4 : vector<1x8x24xf32> to vector<8x24xf32>
    %c0_7 = arith.constant 0 : index
    %c0_8 = arith.constant 0 : index
    %6 = vector.load %arg6[%c0_7, %c0_8] : memref<1x128xf32, #tpu.memory_space<vmem>>, vector<1x128xf32>
    %c0_9 = arith.constant 0 : index
    %c0_10 = arith.constant 0 : index
    %7 = vector.load %arg4[%c0_9, %c0_10] : memref<24x128xf32, #tpu.memory_space<vmem>>, vector<24x128xf32>
    %cst = arith.constant dense<0.000000e+00> : vector<32x128xf32>
    %8 = tpu.matmul %2, %7, %cst {dimension_numbers = #tpu.dot_dimension_numbers<[1], [0], [0], [1], [0, 0, 1, 1], [], []>} : vector<32x24xf32>, vector<24x128xf32>, vector<32x128xf32> -> vector<32x128xf32>
    %9 = vector.extract_strided_slice %5 {offsets = [0, 4], sizes = [8, 12], strides = [1, 1]} : vector<8x24xf32> to vector<8x12xf32>
    %c0_11 = arith.constant 0 : index
    %c0_12 = arith.constant 0 : index
    %10 = vector.load %arg5[%c0_11, %c0_12] : memref<12x128xf32, #tpu.memory_space<vmem>>, vector<12x128xf32>
    %cst_13 = arith.constant dense<0.000000e+00> : vector<8x128xf32>
    %11 = tpu.matmul %9, %10, %cst_13 {dimension_numbers = #tpu.dot_dimension_numbers<[1], [0], [0], [1], [0, 0, 1, 1], [], []>} : vector<8x12xf32>, vector<12x128xf32>, vector<8x128xf32> -> vector<8x128xf32>
    %12 = vector.extract_strided_slice %2 {offsets = [8, 4], sizes = [24, 12], strides = [1, 1]} : vector<32x24xf32> to vector<24x12xf32>
    %c0_14 = arith.constant 0 : index
    %c0_15 = arith.constant 0 : index
    %13 = vector.load %arg5[%c0_14, %c0_15] : memref<12x128xf32, #tpu.memory_space<vmem>>, vector<12x128xf32>
    %cst_16 = arith.constant dense<0.000000e+00> : vector<24x128xf32>
    %14 = tpu.matmul %12, %13, %cst_16 {dimension_numbers = #tpu.dot_dimension_numbers<[1], [0], [0], [1], [0, 0, 1, 1], [], []>} : vector<24x12xf32>, vector<12x128xf32>, vector<24x128xf32> -> vector<24x128xf32>
    %15 = vector.extract_strided_slice %8 {offsets = [0, 0], sizes = [24, 128], strides = [1, 1]} : vector<32x128xf32> to vector<24x128xf32>
    %16 = arith.addf %15, %14 : vector<24x128xf32>
    %17 = vector.broadcast %6 : vector<1x128xf32> to vector<24x128xf32>
    %18 = arith.addf %16, %17 : vector<24x128xf32>
    %c0_17 = arith.constant 0 : index
    %c0_18 = arith.constant 0 : index
    %c0_19 = arith.constant 0 : index
    %19 = vector.load %arg7[%c0_17, %c0_18, %c0_19] : memref<1x32x128xf32, #tpu.memory_space<vmem>>, vector<1x24x128xf32>
    %20 = vector.shape_cast %19 : vector<1x24x128xf32> to vector<24x128xf32>
    %21 = vector.shape_cast %18 : vector<24x128xf32> to vector<1x24x128xf32>
    tpu.vector_store %arg7[%c0_17, %c0_18, %c0_19], %21 {strides = array<i32>} : memref<1x32x128xf32, #tpu.memory_space<vmem>>, vector<1x24x128xf32>,
    %22 = vector.extract_strided_slice %8 {offsets = [24, 0], sizes = [8, 128], strides = [1, 1]} : vector<32x128xf32> to vector<8x128xf32>
    %23 = arith.addf %22, %11 : vector<8x128xf32>
    %24 = vector.broadcast %6 : vector<1x128xf32> to vector<8x128xf32>
    %25 = arith.addf %23, %24 : vector<8x128xf32>
    %c0_20 = arith.constant 0 : index
    %c24 = arith.constant 24 : index
    %c0_21 = arith.constant 0 : index
    %26 = vector.load %arg7[%c0_20, %c24, %c0_21] : memref<1x32x128xf32, #tpu.memory_space<vmem>>, vector<1x8x128xf32>
    %27 = vector.shape_cast %26 : vector<1x8x128xf32> to vector<8x128xf32>
    %28 = vector.shape_cast %25 : vector<8x128xf32> to vector<1x8x128xf32>
    tpu.vector_store %arg7[%c0_20, %c24, %c0_21], %28 {strides = array<i32>} : memref<1x32x128xf32, #tpu.memory_space<vmem>>, vector<1x8x128xf32>,
    return
  }
  func.func @transform_0(%arg0: i32, %arg1: i32) -> (i32, i32, i32, i32) {
    %c0_i32 = arith.constant 0 : i32
    %c0_i32_0 = arith.constant 0 : i32
    %c0_i32_1 = arith.constant 0 : i32
    return %arg0, %arg1, %c0_i32, %c0_i32_0 : i32, i32, i32, i32
  }
  func.func @transform_1(%arg0: i32, %arg1: i32) -> (i32, i32, i32, i32) {
    %c1_i32 = arith.constant 1 : i32
    %0 = arith.addi %arg1, %c1_i32 : i32
    %c4_i32 = arith.constant 4 : i32
    %1 = arith.muli %0, %c4_i32 : i32
    %c0_i32 = arith.constant 0 : i32
    %c0_i32_0 = arith.constant 0 : i32
    %c0_i32_1 = arith.constant 0 : i32
    return %arg0, %1, %c0_i32, %c0_i32_0 : i32, i32, i32, i32
  }
  func.func @transform_2(%arg0: i32, %arg1: i32) -> (i32, i32) {
    %c0_i32 = arith.constant 0 : i32
    %c0_i32_0 = arith.constant 0 : i32
    %c0_i32_1 = arith.constant 0 : i32
    return %c0_i32, %c0_i32_0 : i32, i32
  }
  func.func @transform_3(%arg0: i32, %arg1: i32) -> (i32, i32) {
    %c0_i32 = arith.constant 0 : i32
    %c0_i32_0 = arith.constant 0 : i32
    %c0_i32_1 = arith.constant 0 : i32
    return %c0_i32, %c0_i32_0 : i32, i32
  }
  func.func @transform_4(%arg0: i32, %arg1: i32) -> (i32, i32) {
    %c0_i32 = arith.constant 0 : i32
    %c0_i32_0 = arith.constant 0 : i32
    %c0_i32_1 = arith.constant 0 : i32
    return %c0_i32, %c0_i32_0 : i32, i32
  }
  func.func @transform_5(%arg0: i32, %arg1: i32) -> (i32, i32, i32) {
    %c0_i32 = arith.constant 0 : i32
    %c0_i32_0 = arith.constant 0 : i32
    return %arg0, %arg1, %c0_i32 : i32, i32, i32
  }
}

</mosaic_0001>

<llo_original>
// kernel: tpu_custom_call.1
$region0: #{tpu_custom_call.1}
  #allocation0 [shape = 'u32[]', space=smem, size = 0x4, offset = 0x4, fixed_abs, tag = 'smem constant byte address 0x4 - core index']
  #allocation1 [shape = 'u32[144,128]{1,0:T(1,128)}', space=vmem, size = 0x12000, scoped, tag = 'internal scratch']
  %s0 = inlined_call_operand.hbm [shape: f32[2,9,8,24], index: 0, kind: input, shape index: {}]
  %s1 = inlined_call_operand.hbm [shape: f32[2,9,8,24], index: 1, kind: input, shape index: {}]
  %s2 = inlined_call_operand.hbm [shape: f32[24,128], index: 2, kind: input, shape index: {}]
  %s3 = inlined_call_operand.hbm [shape: f32[12,128], index: 3, kind: input, shape index: {}]
  %s4 = inlined_call_operand.vmem [shape: f32[1,128], index: 4, kind: input, shape index: {}]
  %s5 = inlined_call_operand.hbm [shape: f32[2,64,128], index: 5, kind: output, shape index: {}]
  %s6 = sld [smem:[#allocation0]]
  $region69: #{tpu_custom_call.1} parent=0
    _
  %s8 = ssub.s32 1, %s6
  %s9 = scalar_select 0, %s8, %s6
  $region1: #{tpu_custom_call.1} parent=0
    #allocation2 [shape = 'u8[32768]{0}', space=vmem, size = 0x8000, scoped, tag = 'input window, operand 0']
    #allocation3 [shape = 's32[2]{0}', space=sflag, size = 0x8, scoped, tag = 'scoped memory for tpu_custom_call.1']
    #allocation4 [shape = 's32[2]{0}', space=sflag, size = 0x8, scoped, tag = 'scoped memory for tpu_custom_call.1']
    #allocation5 [shape = 'u8[8192]{0}', space=vmem, size = 0x2000, scoped, tag = 'input window, operand 1']
    #allocation6 [shape = 's32[2]{0}', space=sflag, size = 0x8, scoped, tag = 'scoped memory for tpu_custom_call.1']
    #allocation7 [shape = 'u8[12288]{0}', space=vmem, size = 0x3000, scoped, tag = 'input window, operand 2, single buffered']
    #allocation8 [shape = 'u8[8192]{0}', space=vmem, size = 0x2000, scoped, tag = 'input window, operand 3, single buffered']
    #allocation9 [shape = 's32[1]{0}', space=sflag, size = 0x4, scoped, tag = 'scoped memory for tpu_custom_call.1']
    #allocation10 [shape = 'u8[32768]{0}', space=vmem, size = 0x8000, scoped, tag = 'output window, operand 0']
    %10 = vsyncpa [#allocation3], 0
    %s11 = scalar_lea.sflag [#allocation3], 1
    %12 = vsyncpa %s11, 0
    %13 = vsyncpa [#allocation6], 0
    %s14 = scalar_lea.sflag [#allocation6], 1
    %15 = vsyncpa %s14, 0
    %16 = vsyncpa [#allocation9], 0
    %17 = vsyncpa [#allocation4], 0
    %s18 = scalar_lea.sflag [#allocation4], 1
    %19 = vsyncpa %s18, 0
    loop: start=0, step=1, limit=6
    $region2: #{tpu_custom_call.1} parent=1 // loop_pre_header
      _
    $region3: #{tpu_custom_call.1} parent=1 // loop_header
      %s21 = sphi 0, %s25
      %p22 = scmp.ge.s32.totalorder %s21, 6
      %s28 = sphi 0, %s40
      %s29 = sphi 0, %s36
      %s30 = sphi 0, %s28
      %s31 = sphi 0, %s29
      %s32 = sphi 0, %s30
      %s33 = sphi 0, %s31
      %s45 = sphi 0, %s47
      %s48 = sphi 0, %s45
      %s49 = sphi 0, %s48
      %s65 = sphi 0, %s49
      %s77 = sphi 0, %s79
      %s80 = sphi 0, %s77
      %s81 = sphi 0, %s80
      %s97 = sphi 0, %s81
      %s101 = sphi 0, %s101
      %s103 = sphi 0, %s101
      %s104 = sphi 0, %s103
      %s118 = sphi 0, %s104
      %s122 = sphi 0, %s122
      %s124 = sphi 0, %s122
      %s125 = sphi 0, %s124
      %s139 = sphi 0, %s125
      %s143 = sphi 0, %s143
      %s145 = sphi 0, %s143
      %s146 = sphi 0, %s145
      %s160 = sphi 0, %s146
      %s168 = sphi 0, %s170
      %s171 = sphi 0, %s168
      %s172 = sphi 0, %s171
      %s188 = sphi 0, %s172
    $region4: #{tpu_custom_call.1} parent=1 // loop_header_branch
      %24 = sbr.rel (%p22) target = $region8
    $region5: #{tpu_custom_call.1} parent=1 // loop_body
      %s26 = ssub.s32 %s21, 1
      %s27 = ssub.s32 %s21, 2
      %s34 = sadd.s32 1, %s29
      %p35 = scmp.ge.s32.totalorder %s34, 2
      %s36 = scalar_select %p35, 0, %s34
      %s37 = sadd.s32 1, %s28
      %s38 = scalar_select %p35, %s37, %s28
      %p39 = scmp.ge.s32.totalorder %s38, 2
      %s40 = scalar_select %p39, 0, %s38
      %s41 = ssub.s32 %s28, %s40
      %s42 = ssub.s32 %s29, %s36
      %s43 = sor.u32 %s41, %s42
      %p44 = scmp.eq.s32.totalorder %s43, 0
      %s46 = sadd.s32 %s45, 1
      %s47 = scalar_select %p44, %s45, %s46
      %p50 = pneg %p44
      %p51 = scmp.eq.s32.totalorder %s21, 3
      %p52 = por %p50, %p51
      %p53 = scmp.ne.s32.totalorder %s45, %s48
      %p54 = scmp.eq.s32.totalorder %s21, 0
      %p55 = por %p53, %p54
      %p56 = scmp.ne.s32.totalorder %s45, %s48
      %p57 = scmp.eq.s32.totalorder %s26, 3
      %p58 = por %p56, %p57
      %p59 = scmp.ne.s32.totalorder %s48, %s49
      %p60 = scmp.eq.s32.totalorder %s26, 0
      %p61 = por %p59, %p60
      %p62 = scmp.ne.s32.totalorder %s48, %s49
      %p63 = scmp.eq.s32.totalorder %s27, 3
      %p64 = por %p62, %p63
      %p66 = scmp.ne.s32.totalorder %s49, %s65
      %p67 = scmp.eq.s32.totalorder %s27, 0
      %p68 = por %p66, %p67
      %s69 = sadd.s32 %s29, 1
      %s70 = smul.u32 %s69, 4
      %s71 = sadd.s32 %s36, 1
      %s72 = smul.u32 %s71, 4
      %s73 = ssub.s32 %s28, %s40
      %s74 = ssub.s32 %s70, %s72
      %s75 = sor.u32 %s73, %s74
      %p76 = scmp.eq.s32.totalorder %s75, 0
      %s78 = sadd.s32 %s77, 1
      %s79 = scalar_select %p76, %s77, %s78
      %p82 = pneg %p76
      %p83 = scmp.eq.s32.totalorder %s21, 3
      %p84 = por %p82, %p83
      %p85 = scmp.ne.s32.totalorder %s77, %s80
      %p86 = scmp.eq.s32.totalorder %s21, 0
      %p87 = por %p85, %p86
      %p88 = scmp.ne.s32.totalorder %s77, %s80
      %p89 = scmp.eq.s32.totalorder %s26, 3
      %p90 = por %p88, %p89
      %p91 = scmp.ne.s32.totalorder %s80, %s81
      %p92 = scmp.eq.s32.totalorder %s26, 0
      %p93 = por %p91, %p92
      %p94 = scmp.ne.s32.totalorder %s80, %s81
      %p95 = scmp.eq.s32.totalorder %s27, 3
      %p96 = por %p94, %p95
      %p98 = scmp.ne.s32.totalorder %s81, %s97
      %p99 = scmp.eq.s32.totalorder %s27, 0
      %p100 = por %p98, %p99
      %s102 = sadd.s32 %s101, 1
      %p105 = scmp.eq.s32.totalorder %s21, 3
      %p106 = scmp.ne.s32.totalorder %s101, %s103
      %p107 = scmp.eq.s32.totalorder %s21, 0
      %p108 = por %p106, %p107
      %p109 = scmp.ne.s32.totalorder %s101, %s103
      %p110 = scmp.eq.s32.totalorder %s26, 3
      %p111 = por %p109, %p110
      %p112 = scmp.ne.s32.totalorder %s103, %s104
      %p113 = scmp.eq.s32.totalorder %s26, 0
      %p114 = por %p112, %p113
      %p115 = scmp.ne.s32.totalorder %s103, %s104
      %p116 = scmp.eq.s32.totalorder %s27, 3
      %p117 = por %p115, %p116
      %p119 = scmp.ne.s32.totalorder %s104, %s118
      %p120 = scmp.eq.s32.totalorder %s27, 0
      %p121 = por %p119, %p120
      %s123 = sadd.s32 %s122, 1
      %p126 = scmp.eq.s32.totalorder %s21, 3
      %p127 = scmp.ne.s32.totalorder %s122, %s124
      %p128 = scmp.eq.s32.totalorder %s21, 0
      %p129 = por %p127, %p128
      %p130 = scmp.ne.s32.totalorder %s122, %s124
      %p131 = scmp.eq.s32.totalorder %s26, 3
      %p132 = por %p130, %p131
      %p133 = scmp.ne.s32.totalorder %s124, %s125
      %p134 = scmp.eq.s32.totalorder %s26, 0
      %p135 = por %p133, %p134
      %p136 = scmp.ne.s32.totalorder %s124, %s125
      %p137 = scmp.eq.s32.totalorder %s27, 3
      %p138 = por %p136, %p137
      %p140 = scmp.ne.s32.totalorder %s125, %s139
      %p141 = scmp.eq.s32.totalorder %s27, 0
      %p142 = por %p140, %p141
      %s144 = sadd.s32 %s143, 1
      %p147 = scmp.eq.s32.totalorder %s21, 3
      %p148 = scmp.ne.s32.totalorder %s143, %s145
      %p149 = scmp.eq.s32.totalorder %s21, 0
      %p150 = por %p148, %p149
      %p151 = scmp.ne.s32.totalorder %s143, %s145
      %p152 = scmp.eq.s32.totalorder %s26, 3
      %p153 = por %p151, %p152
      %p154 = scmp.ne.s32.totalorder %s145, %s146
      %p155 = scmp.eq.s32.totalorder %s26, 0
      %p156 = por %p154, %p155
      %p157 = scmp.ne.s32.totalorder %s145, %s146
      %p158 = scmp.eq.s32.totalorder %s27, 3
      %p159 = por %p157, %p158
      %p161 = scmp.ne.s32.totalorder %s146, %s160
      %p162 = scmp.eq.s32.totalorder %s27, 0
      %p163 = por %p161, %p162
      %s164 = ssub.s32 %s28, %s40
      %s165 = ssub.s32 %s29, %s36
      %s166 = sor.u32 %s164, %s165
      %p167 = scmp.eq.s32.totalorder %s166, 0
      %s169 = sadd.s32 %s168, 1
      %s170 = scalar_select %p167, %s168, %s169
      %p173 = pneg %p167
      %p174 = scmp.eq.s32.totalorder %s21, 3
      %p175 = por %p173, %p174
      %p176 = scmp.ne.s32.totalorder %s168, %s171
      %p177 = scmp.eq.s32.totalorder %s21, 0
      %p178 = por %p176, %p177
      %p179 = scmp.ne.s32.totalorder %s168, %s171
      %p180 = scmp.eq.s32.totalorder %s26, 3
      %p181 = por %p179, %p180
      %p182 = scmp.ne.s32.totalorder %s171, %s172
      %p183 = scmp.eq.s32.totalorder %s26, 0
      %p184 = por %p182, %p183
      %p185 = scmp.ne.s32.totalorder %s171, %s172
      %p186 = scmp.eq.s32.totalorder %s27, 3
      %p187 = por %p185, %p186
      %p189 = scmp.ne.s32.totalorder %s172, %s188
      %p190 = scmp.eq.s32.totalorder %s27, 0
      %p191 = por %p189, %p190
      %p192 = scmp.le.s32.totalorder 1, %s21
      %p193 = scmp.lt.s32.totalorder %s21, 5
      %p194 = pnand %p192, %p193
      %p195 = pneg %p194
      // Predicated region
      $region9: #{tpu_custom_call.1} parent=5 // pred_check
        _
      $region10: #{tpu_custom_call.1} parent=5 // pred_check_branch
        %197 = sbr.rel (%p194) target = $region12
      $region11: #{tpu_custom_call.1} parent=5 // pred_region
        %s198 = ssub.s32 %s21, 1
        // Predicated region
        $region13: #{tpu_custom_call.1} parent=11 // pred_check
          %p199 = pneg %p114
        $region14: #{tpu_custom_call.1} parent=11 // pred_check_branch
          %201 = sbr.rel (%p199) target = $region16
        $region15: #{tpu_custom_call.1} parent=11 // pred_region
          %s203 = ssub.s32 384, 384
          %204 = vsyncadd [#allocation6], %s203
          %s205 = sshll.u32 [#allocation7], 4
          %s206 = int_to_ptr.vmem [resolvable:$true] %s205
          %211 = dma.hbm_to_vmem [thread:$0]  %s2, 384, %s206, [#allocation6], 128, 128, 8
        $region16: #{tpu_custom_call.1} parent=11 // pred_fallthru
          _
        // Predicated region
        $region17: #{tpu_custom_call.1} parent=11 // pred_check
          %p212 = pneg %p135
        $region18: #{tpu_custom_call.1} parent=11 // pred_check_branch
          %214 = sbr.rel (%p212) target = $region20
        $region19: #{tpu_custom_call.1} parent=11 // pred_region
          %s216 = ssub.s32 256, 256
          %217 = vsyncadd [#allocation9], %s216
          %s218 = sshll.u32 [#allocation8], 4
          %s219 = int_to_ptr.vmem [resolvable:$true] %s218
          %224 = dma.hbm_to_vmem [thread:$0]  %s3, 256, %s219, [#allocation9], 128, 128, 8
        $region20: #{tpu_custom_call.1} parent=11 // pred_fallthru
          _
        // Predicated region
        $region21: #{tpu_custom_call.1} parent=11 // pred_check
          %p225 = pneg %p156
        $region22: #{tpu_custom_call.1} parent=11 // pred_check_branch
          %227 = sbr.rel (%p225) target = $region24
        $region23: #{tpu_custom_call.1} parent=11 // pred_region
          _
        $region24: #{tpu_custom_call.1} parent=11 // pred_fallthru
          _
      $region12: #{tpu_custom_call.1} parent=5 // pred_fallthru
        _
      %p228 = scmp.lt.s32.totalorder %s21, 4
      // Predicated region
      $region25: #{tpu_custom_call.1} parent=5 // pred_check
        %p229 = pneg %p228
      $region26: #{tpu_custom_call.1} parent=5 // pred_check_branch
        %231 = sbr.rel (%p229) target = $region28
      $region27: #{tpu_custom_call.1} parent=5 // pred_region
        // Predicated region
        $region29: #{tpu_custom_call.1} parent=27 // pred_check
          %p232 = pneg %p55
        $region30: #{tpu_custom_call.1} parent=27 // pred_check_branch
          %234 = sbr.rel (%p232) target = $region32
        $region31: #{tpu_custom_call.1} parent=27 // pred_region
          %s235 = sand.u32 %s45, 1
          %s236 = scalar_lea.sflag [#allocation3], %s235
          %s237 = sand.u32 %s45, 1
          %s238 = smul.addr %s237, 32
          %s239 = scalar_lea.vmem [#allocation2], %s238
          %s240 = smul.u32 4, %s29
          %s241 = ssub.s32 9, %s240
          %p242 = scmp.lt.s32.totalorder %s241, 4
          %s243 = scalar_select %p242, %s241, 4
          %s244 = smul.u32 128, %s243
          %s246 = ssub.s32 512, %s244
          %247 = vsyncadd %s236, %s246
          %p248 = scmp.ne.s32.totalorder 0, %s244
          %s249 = smul.addr %s28, 9
          %s250 = sadd.s32 %s240, %s249
          %s251 = smul.addr %s250, 128
          %s252 = scalar_lea.hbm %s0, %s251
          %s253 = smul.u32 8, %s243
          %s254 = sshll.u32 %s239, 4
          %s255 = int_to_ptr.vmem [resolvable:$true] %s254
          %s256 = sshll.u32 %s253, 4
          %260 = dma.hbm_to_vmem [thread:$0]  (%p248), %s252, %s256, %s255, %s236, 128, 128, 8
        $region32: #{tpu_custom_call.1} parent=27 // pred_fallthru
          _
        // Predicated region
        $region33: #{tpu_custom_call.1} parent=27 // pred_check
          %p261 = pneg %p87
        $region34: #{tpu_custom_call.1} parent=27 // pred_check_branch
          %263 = sbr.rel (%p261) target = $region36
        $region35: #{tpu_custom_call.1} parent=27 // pred_region
          %s264 = sand.u32 %s21, 1
          %s265 = scalar_lea.sflag [#allocation6], %s264
          %s266 = sand.u32 %s77, 1
          %s267 = smul.addr %s266, 8
          %s268 = scalar_lea.vmem [#allocation5], %s267
          %s269 = sadd.s32 %s29, 1
          %s270 = smul.u32 %s269, 4
          %s272 = ssub.s32 128, 128
          %273 = vsyncadd %s265, %s272
          %s274 = smul.addr %s28, 9
          %s275 = sadd.s32 %s270, %s274
          %s276 = smul.addr %s275, 128
          %s277 = scalar_lea.hbm %s1, %s276
          %s279 = sshll.u32 %s268, 4
          %s280 = int_to_ptr.vmem [resolvable:$true] %s279
          %282 = dma.hbm_to_vmem [thread:$0]  %s277, 128, %s280, %s265
        $region36: #{tpu_custom_call.1} parent=27 // pred_fallthru
          _
      $region28: #{tpu_custom_call.1} parent=5 // pred_fallthru
        _
      %p283 = scmp.le.s32.totalorder 1, %s21
      %p284 = scmp.lt.s32.totalorder %s21, 5
      %p285 = pnand %p283, %p284
      %p286 = pneg %p285
      // Predicated region
      $region37: #{tpu_custom_call.1} parent=5 // pred_check
        _
      $region38: #{tpu_custom_call.1} parent=5 // pred_check_branch
        %288 = sbr.rel (%p285) target = $region40
      $region39: #{tpu_custom_call.1} parent=5 // pred_region
        %s289 = ssub.s32 %s21, 1
        %s290 = sand.u32 %s48, 1
        %s291 = scalar_lea.sflag [#allocation3], %s290
        %s292 = sand.u32 %s48, 1
        %s293 = smul.addr %s292, 32
        %s294 = scalar_lea.vmem [#allocation2], %s293
        // Predicated region
        $region41: #{tpu_custom_call.1} parent=39 // pred_check
          %p295 = pneg %p61
        $region42: #{tpu_custom_call.1} parent=39 // pred_check_branch
          %297 = sbr.rel (%p295) target = $region44
        $region43: #{tpu_custom_call.1} parent=39 // pred_region
          %298 = dma.done %s291, 512
        $region44: #{tpu_custom_call.1} parent=39 // pred_fallthru
          _
        %s299 = sand.u32 %s26, 1
        %s300 = scalar_lea.sflag [#allocation6], %s299
        %s301 = sand.u32 %s80, 1
        %s302 = smul.addr %s301, 8
        %s303 = scalar_lea.vmem [#allocation5], %s302
        // Predicated region
        $region45: #{tpu_custom_call.1} parent=39 // pred_check
          %p304 = pneg %p93
        $region46: #{tpu_custom_call.1} parent=39 // pred_check_branch
          %306 = sbr.rel (%p304) target = $region48
        $region47: #{tpu_custom_call.1} parent=39 // pred_region
          %307 = dma.done %s300, 128
        $region48: #{tpu_custom_call.1} parent=39 // pred_fallthru
          _
        // Predicated region
        $region49: #{tpu_custom_call.1} parent=39 // pred_check
          %p308 = pneg %p114
        $region50: #{tpu_custom_call.1} parent=39 // pred_check_branch
          %310 = sbr.rel (%p308) target = $region52
        $region51: #{tpu_custom_call.1} parent=39 // pred_region
          %311 = dma.done [#allocation6], 384
        $region52: #{tpu_custom_call.1} parent=39 // pred_fallthru
          _
        // Predicated region
        $region53: #{tpu_custom_call.1} parent=39 // pred_check
          %p312 = pneg %p135
        $region54: #{tpu_custom_call.1} parent=39 // pred_check_branch
          %314 = sbr.rel (%p312) target = $region56
        $region55: #{tpu_custom_call.1} parent=39 // pred_region
          %315 = dma.done [#allocation9], 256
        $region56: #{tpu_custom_call.1} parent=39 // pred_fallthru
          _
        %s316 = sand.u32 %s48, 1
        %s317 = scalar_lea.sflag [#allocation3], %s316
        %s318 = sand.u32 %s48, 1
        %s319 = smul.addr %s318, 32
        %s320 = scalar_lea.vmem [#allocation2], %s319
        %p321 = pneg %p61
        %p322 = pneg %p58
        %s323 = sand.u32 %s26, 1
        %s324 = scalar_lea.sflag [#allocation6], %s323
        %s325 = sand.u32 %s80, 1
        %s326 = smul.addr %s325, 8
        %s327 = scalar_lea.vmem [#allocation5], %s326
        %p328 = pneg %p93
        %p329 = pneg %p90
        %p330 = pneg %p114
        %p331 = pneg %p111
        %p332 = pneg %p135
        %p333 = pneg %p132
        %p334 = pneg %p156
        %p335 = pneg %p153
        %p336 = pneg %p184
        %p337 = pneg %p181
        %s338 = sand.u32 %s171, 1
        %s339 = scalar_lea.sflag [#allocation4], %s338
        %s340 = sand.u32 %s171, 1
        %s341 = smul.addr %s340, 32
        %s342 = scalar_lea.vmem [#allocation10], %s341
        %s343 = smul.u32 4, %s31
        %s344 = ssub.s32 9, %s343
        %p345 = scmp.lt.s32.totalorder %s344, 4
        %s346 = scalar_select %p345, %s344, 4
        %s347 = smul.u32 128, %s346
        %s348 = sadd.s32 %s31, 1
        %s349 = smul.u32 %s348, 4
        %s350 = smul.u32 4, %s31
        %v351 = vld [vmem:[%s294] sm:$0xff]
        %v352 = vld [vmem:[%s294 + $0x8] sm:$0xff]
        %v353 = vld [vmem:[%s294 + $0x10] sm:$0xff]
        %v354 = vld [vmem:[%s294 + $0x18] sm:$0xff]
        %v355 = vld [vmem:[%s303] sm:$0xff]
        %v356 = vld [vmem:[%s4] sm:$0x1]
        %v357 = vld [vmem:[#allocation7] sm:$0xff]
        %v358 = vld [vmem:[#allocation7 + $0x8] sm:$0xff]
        %v359 = vld [vmem:[#allocation7 + $0x10] sm:$0xff]
        %vm360 = vcmask 195584
        %v362 = vsel %vm360, %v351, 0
        %v365 = vsel %vm360, %v352, 0
        %v368 = vsel %vm360, %v353, 0
        %v371 = vsel %vm360, %v354, 0
        %373 = vmatprep.subr.mxu0 0.0
        %374 = vmatpush1.msra.mxu0 %v357
        %375 = vmatprep.subr.mxu0 0.0
        %376 = vmatpush1.msra.mxu0 %v358
        %377 = vmatprep.subr.mxu0 0.0
        %378 = vmatpush1.msra.mxu0 %v359
        %379 = vmatprep.subr.mxu0 0.0
        %380 = vmatpush1.msra.mxu0 0.0
        %381 = vmatprep.subr.mxu0 0.0
        %382 = vmatpush1.msra.mxu0 0.0
        %383 = vmatprep.subr.mxu0 0.0
        %384 = vmatpush1.msra.mxu0 0.0
        %385 = vmatprep.subr.mxu0 0.0
        %386 = vmatpush1.msra.mxu0 0.0
        %387 = vmatprep.subr.mxu0 0.0
        %388 = vmatpush1.msra.mxu0 0.0
        %389 = vmatprep.subr.mxu0 0.0
        %390 = vmatpush1.msra.mxu0 0.0
        %391 = vmatprep.subr.mxu0 0.0
        %392 = vmatpush1.msra.mxu0 0.0
        %393 = vmatprep.subr.mxu0 0.0
        %394 = vmatpush1.msra.mxu0 0.0
        %395 = vmatprep.subr.mxu0 0.0
        %396 = vmatpush1.msra.mxu0 0.0
        %397 = vmatprep.subr.mxu0 0.0
        %398 = vmatpush1.msra.mxu0 0.0
        %399 = vmatprep.subr.mxu0 0.0
        %400 = vmatpush1.msra.mxu0 0.0
        %401 = vmatprep.subr.mxu0 0.0
        %402 = vmatpush1.msra.mxu0 0.0
        %403 = vmatprep.subr.mxu0 0.0
        %404 = vmatpush1.msra.mxu0 0.0
        %405 = vmatprep.subr.mxu0 0.0
        %406 = vmatpush1.msra.mxu0 0.0
        %407 = vmatprep.subr.mxu0 0.0
        %408 = vmatpush1.msra.mxu0 0.0
        %409 = vmatprep.subr.mxu0 0.0
        %410 = vmatpush1.msra.mxu0 0.0
        %411 = vmatprep.subr.mxu0 0.0
        %412 = vmatpush1.msra.mxu0 0.0
        %413 = vmatprep.subr.mxu0 0.0
        %414 = vmatpush1.msra.mxu0 0.0
        %415 = vmatprep.subr.mxu0 0.0
        %416 = vmatpush1.msra.mxu0 0.0
        %417 = vmatprep.subr.mxu0 0.0
        %418 = vmatpush1.msra.mxu0 0.0
        %419 = vmatprep.subr.mxu0 0.0
        %420 = vmatpush1.msra.mxu0 0.0
        %421 = vmatprep.subr.mxu0 0.0
        %422 = vmatpush1.msra.mxu0 0.0
        %423 = vmatprep.subr.mxu0 0.0
        %424 = vmatpush1.msra.mxu0 0.0
        %425 = vmatprep.subr.mxu0 0.0
        %426 = vmatpush1.msra.mxu0 0.0
        %427 = vmatprep.subr.mxu0 0.0
        %428 = vmatpush1.msra.mxu0 0.0
        %429 = vmatprep.subr.mxu0 0.0
        %430 = vmatpush1.msra.mxu0 0.0
        %431 = vmatprep.subr.mxu0 0.0
        %432 = vmatpush1.msra.mxu0 0.0
        %433 = vmatprep.subr.mxu0 0.0
        %434 = vmatpush1.msra.mxu0 0.0
        %435 = vmatprep.subr.mxu0 0.0
        %436 = vmatpush1.msra.mxu0 0.0
        %437 = vmatprep.mubr.f32.mxu0 0.0
        %438 = vmatmul.mubr.f32.gmra.mrb[0].mxu0 %v362
        %v439 = vpop.f32.mrb[0].mxu0
        %v440 = vadd.f32 0.0, %v439
        %v441 = vpop.f32.mrb[0].mxu0
        %442 = vmatprep.mubr.f32.mxu0 0.0
        %443 = vmatmul.mubr.f32.gmra.mrb[0].mxu0 %v365
        %v444 = vpop.f32.mrb[0].mxu0
        %v445 = vadd.f32 0.0, %v444
        %v446 = vpop.f32.mrb[0].mxu0
        %447 = vmatprep.mubr.f32.mxu0 0.0
        %448 = vmatmul.mubr.f32.gmra.mrb[0].mxu0 %v368
        %v449 = vpop.f32.mrb[0].mxu0
        %v450 = vadd.f32 0.0, %v449
        %v451 = vpop.f32.mrb[0].mxu0
        %452 = vmatprep.mubr.f32.mxu0 0.0
        %453 = vmatmul.mubr.f32.gmra.mrb[0].mxu0 %v371
        %v454 = vpop.f32.mrb[0].mxu0
        %v455 = vadd.f32 0.0, %v454
        %v456 = vpop.f32.mrb[0].mxu0
        %457 = vdwg.mxu0
        %v458 = vld [vmem:[#allocation8] sm:$0xff]
        %v459 = vld [vmem:[#allocation8 + $0x8] sm:$0xf]
        %461 = vrot.lane.b32.xlu0 %v355, 124
        %v462 = vpop.permute.xlu0 %461
        %vm463 = vcmask 97280
        %v464 = vsel %vm463, %v462, 0
        %vm466 = vcmask 1043456
        %v468 = vsel %vm466, %v459, 0
        %470 = vmatprep.subr.mxu0 0.0
        %471 = vmatpush1.msra.mxu0 %v458
        %472 = vmatprep.subr.mxu0 0.0
        %473 = vmatpush1.msra.mxu0 %v468
        %474 = vmatprep.subr.mxu0 0.0
        %475 = vmatpush1.msra.mxu0 0.0
        %476 = vmatprep.subr.mxu0 0.0
        %477 = vmatpush1.msra.mxu0 0.0
        %478 = vmatprep.subr.mxu0 0.0
        %479 = vmatpush1.msra.mxu0 0.0
        %480 = vmatprep.subr.mxu0 0.0
        %481 = vmatpush1.msra.mxu0 0.0
        %482 = vmatprep.subr.mxu0 0.0
        %483 = vmatpush1.msra.mxu0 0.0
        %484 = vmatprep.subr.mxu0 0.0
        %485 = vmatpush1.msra.mxu0 0.0
        %486 = vmatprep.subr.mxu0 0.0
        %487 = vmatpush1.msra.mxu0 0.0
        %488 = vmatprep.subr.mxu0 0.0
        %489 = vmatpush1.msra.mxu0 0.0
        %490 = vmatprep.subr.mxu0 0.0
        %491 = vmatpush1.msra.mxu0 0.0
        %492 = vmatprep.subr.mxu0 0.0
        %493 = vmatpush1.msra.mxu0 0.0
        %494 = vmatprep.subr.mxu0 0.0
        %495 = vmatpush1.msra.mxu0 0.0
        %496 = vmatprep.subr.mxu0 0.0
        %497 = vmatpush1.msra.mxu0 0.0
        %498 = vmatprep.subr.mxu0 0.0
        %499 = vmatpush1.msra.mxu0 0.0
        %500 = vmatprep.subr.mxu0 0.0
        %501 = vmatpush1.msra.mxu0 0.0
        %502 = vmatprep.subr.mxu0 0.0
        %503 = vmatpush1.msra.mxu0 0.0
        %504 = vmatprep.subr.mxu0 0.0
        %505 = vmatpush1.msra.mxu0 0.0
        %506 = vmatprep.subr.mxu0 0.0
        %507 = vmatpush1.msra.mxu0 0.0
        %508 = vmatprep.subr.mxu0 0.0
        %509 = vmatpush1.msra.mxu0 0.0
        %510 = vmatprep.subr.mxu0 0.0
        %511 = vmatpush1.msra.mxu0 0.0
        %512 = vmatprep.subr.mxu0 0.0
        %513 = vmatpush1.msra.mxu0 0.0
        %514 = vmatprep.subr.mxu0 0.0
        %515 = vmatpush1.msra.mxu0 0.0
        %516 = vmatprep.subr.mxu0 0.0
        %517 = vmatpush1.msra.mxu0 0.0
        %518 = vmatprep.subr.mxu0 0.0
        %519 = vmatpush1.msra.mxu0 0.0
        %520 = vmatprep.subr.mxu0 0.0
        %521 = vmatpush1.msra.mxu0 0.0
        %522 = vmatprep.subr.mxu0 0.0
        %523 = vmatpush1.msra.mxu0 0.0
        %524 = vmatprep.subr.mxu0 0.0
        %525 = vmatpush1.msra.mxu0 0.0
        %526 = vmatprep.subr.mxu0 0.0
        %527 = vmatpush1.msra.mxu0 0.0
        %528 = vmatprep.subr.mxu0 0.0
        %529 = vmatpush1.msra.mxu0 0.0
        %530 = vmatprep.subr.mxu0 0.0
        %531 = vmatpush1.msra.mxu0 0.0
        %532 = vmatprep.subr.mxu0 0.0
        %533 = vmatpush1.msra.mxu0 0.0
        %534 = vmatprep.mubr.f32.mxu0 0.0
        %535 = vmatmul.mubr.f32.gmra.mrb[0].mxu0 %v464
        %v536 = vpop.f32.mrb[0].mxu0
        %v537 = vadd.f32 0.0, %v536
        %v538 = vpop.f32.mrb[0].mxu0
        %539 = vdwg.mxu0
        %540 = vrot.lane.b32.xlu0 %v352, 124
        %v541 = vpop.permute.xlu0 %540
        %542 = vrot.lane.b32.xlu0 %v353, 124
        %v543 = vpop.permute.xlu0 %542
        %544 = vrot.lane.b32.xlu0 %v354, 124
        %v545 = vpop.permute.xlu0 %544
        %v546 = vsel %vm463, %v541, 0
        %v548 = vsel %vm463, %v543, 0
        %v550 = vsel %vm463, %v545, 0
        %552 = vmatprep.subr.mxu0 0.0
        %553 = vmatpush1.msra.mxu0 %v458
        %554 = vmatprep.subr.mxu0 0.0
        %555 = vmatpush1.msra.mxu0 %v468
        %556 = vmatprep.subr.mxu0 0.0
        %557 = vmatpush1.msra.mxu0 0.0
        %558 = vmatprep.subr.mxu0 0.0
        %559 = vmatpush1.msra.mxu0 0.0
        %560 = vmatprep.subr.mxu0 0.0
        %561 = vmatpush1.msra.mxu0 0.0
        %562 = vmatprep.subr.mxu0 0.0
        %563 = vmatpush1.msra.mxu0 0.0
        %564 = vmatprep.subr.mxu0 0.0
        %565 = vmatpush1.msra.mxu0 0.0
        %566 = vmatprep.subr.mxu0 0.0
        %567 = vmatpush1.msra.mxu0 0.0
        %568 = vmatprep.subr.mxu0 0.0
        %569 = vmatpush1.msra.mxu0 0.0
        %570 = vmatprep.subr.mxu0 0.0
        %571 = vmatpush1.msra.mxu0 0.0
        %572 = vmatprep.subr.mxu0 0.0
        %573 = vmatpush1.msra.mxu0 0.0
        %574 = vmatprep.subr.mxu0 0.0
        %575 = vmatpush1.msra.mxu0 0.0
        %576 = vmatprep.subr.mxu0 0.0
        %577 = vmatpush1.msra.mxu0 0.0
        %578 = vmatprep.subr.mxu0 0.0
        %579 = vmatpush1.msra.mxu0 0.0
        %580 = vmatprep.subr.mxu0 0.0
        %581 = vmatpush1.msra.mxu0 0.0
        %582 = vmatprep.subr.mxu0 0.0
        %583 = vmatpush1.msra.mxu0 0.0
        %584 = vmatprep.subr.mxu0 0.0
        %585 = vmatpush1.msra.mxu0 0.0
        %586 = vmatprep.subr.mxu0 0.0
        %587 = vmatpush1.msra.mxu0 0.0
        %588 = vmatprep.subr.mxu0 0.0
        %589 = vmatpush1.msra.mxu0 0.0
        %590 = vmatprep.subr.mxu0 0.0
        %591 = vmatpush1.msra.mxu0 0.0
        %592 = vmatprep.subr.mxu0 0.0
        %593 = vmatpush1.msra.mxu0 0.0
        %594 = vmatprep.subr.mxu0 0.0
        %595 = vmatpush1.msra.mxu0 0.0
        %596 = vmatprep.subr.mxu0 0.0
        %597 = vmatpush1.msra.mxu0 0.0
        %598 = vmatprep.subr.mxu0 0.0
        %599 = vmatpush1.msra.mxu0 0.0
        %600 = vmatprep.subr.mxu0 0.0
        %601 = vmatpush1.msra.mxu0 0.0
        %602 = vmatprep.subr.mxu0 0.0
        %603 = vmatpush1.msra.mxu0 0.0
        %604 = vmatprep.subr.mxu0 0.0
        %605 = vmatpush1.msra.mxu0 0.0
        %606 = vmatprep.subr.mxu0 0.0
        %607 = vmatpush1.msra.mxu0 0.0
        %608 = vmatprep.subr.mxu0 0.0
        %609 = vmatpush1.msra.mxu0 0.0
        %610 = vmatprep.subr.mxu0 0.0
        %611 = vmatpush1.msra.mxu0 0.0
        %612 = vmatprep.subr.mxu0 0.0
        %613 = vmatpush1.msra.mxu0 0.0
        %614 = vmatprep.subr.mxu0 0.0
        %615 = vmatpush1.msra.mxu0 0.0
        %616 = vmatprep.mubr.f32.mxu0 0.0
        %617 = vmatmul.mubr.f32.gmra.mrb[0].mxu0 %v546
        %v618 = vpop.f32.mrb[0].mxu0
        %v619 = vadd.f32 0.0, %v618
        %v620 = vpop.f32.mrb[0].mxu0
        %621 = vmatprep.mubr.f32.mxu0 0.0
        %622 = vmatmul.mubr.f32.gmra.mrb[0].mxu0 %v548
        %v623 = vpop.f32.mrb[0].mxu0
        %v624 = vadd.f32 0.0, %v623
        %v625 = vpop.f32.mrb[0].mxu0
        %626 = vmatprep.mubr.f32.mxu0 0.0
        %627 = vmatmul.mubr.f32.gmra.mrb[0].mxu0 %v550
        %v628 = vpop.f32.mrb[0].mxu0
        %v629 = vadd.f32 0.0, %v628
        %v630 = vpop.f32.mrb[0].mxu0
        %631 = vdwg.mxu0
        %v632 = vadd.f32 %v440, %v619
        %v633 = vadd.f32 %v445, %v624
        %v634 = vadd.f32 %v450, %v629
        %v636 = vlaneseq
        %v637 = vshrl.u32 %v636, 7
        %v638 = vsub.s32 0, %v637
        %v639 = vrot.slane %v356, %v638
        %v641 = vadd.f32 %v632, %v639
        %v642 = vadd.f32 %v633, %v639
        %v643 = vadd.f32 %v634, %v639
        %644 = vst [vmem:[%s342] sm:$0xff] %v641
        %645 = vst [vmem:[%s342 + $0x8] sm:$0xff] %v642
        %646 = vst [vmem:[%s342 + $0x10] sm:$0xff] %v643
        %v647 = vadd.f32 %v455, %v537
        %v648 = vadd.f32 %v647, %v639
        %649 = vst [vmem:[%s342 + $0x18] sm:$0xff] %v648
        %s650 = sand.u32 %s171, 1
        %s651 = scalar_lea.sflag [#allocation4], %s650
        %s652 = sand.u32 %s171, 1
        %s653 = smul.addr %s652, 32
        %s654 = scalar_lea.vmem [#allocation10], %s653
        // Predicated region
        $region57: #{tpu_custom_call.1} parent=39 // pred_check
          %p655 = pneg %p181
        $region58: #{tpu_custom_call.1} parent=39 // pred_check_branch
          %657 = sbr.rel (%p655) target = $region60
        $region59: #{tpu_custom_call.1} parent=39 // pred_region
          %s658 = smul.u32 4, %s31
          %s660 = ssub.s32 512, 512
          %661 = vsyncadd %s651, %s660
          %s662 = smul.addr %s30, 8
          %s663 = sadd.s32 %s658, %s662
          %s664 = smul.addr %s663, 128
          %s665 = scalar_lea.hbm %s5, %s664
          %s666 = sshll.u32 %s654, 4
          %s667 = int_to_ptr.vmem [resolvable:$true] %s666
          %672 = dma.vmem_to_hbm [thread:$0]  %s667, 512, %s665, %s651, 128, 128, 8
        $region60: #{tpu_custom_call.1} parent=39 // pred_fallthru
          _
      $region40: #{tpu_custom_call.1} parent=5 // pred_fallthru
        _
      %p673 = scmp.le.s32.totalorder 2, %s21
      // Predicated region
      $region61: #{tpu_custom_call.1} parent=5 // pred_check
        %p674 = pneg %p673
      $region62: #{tpu_custom_call.1} parent=5 // pred_check_branch
        %676 = sbr.rel (%p674) target = $region64
      $region63: #{tpu_custom_call.1} parent=5 // pred_region
        %s677 = ssub.s32 %s21, 2
        // Predicated region
        $region65: #{tpu_custom_call.1} parent=63 // pred_check
          %p678 = pneg %p187
        $region66: #{tpu_custom_call.1} parent=63 // pred_check_branch
          %680 = sbr.rel (%p678) target = $region68
        $region67: #{tpu_custom_call.1} parent=63 // pred_region
          %s681 = sand.u32 %s172, 1
          %s682 = scalar_lea.sflag [#allocation4], %s681
          %s683 = sand.u32 %s172, 1
          %s684 = smul.addr %s683, 32
          %s685 = scalar_lea.vmem [#allocation10], %s684
          %686 = dma.done %s682, 512
        $region68: #{tpu_custom_call.1} parent=63 // pred_fallthru
          _
      $region64: #{tpu_custom_call.1} parent=5 // pred_fallthru
        _
    $region6: #{tpu_custom_call.1} parent=1 // loop_footer
      %s25 = sadd.s32 1, %s21
    $region7: #{tpu_custom_call.1} parent=1 // loop_footer_branch
      %20 = sbr.rel target = $region3
    $region8: #{tpu_custom_call.1} parent=1 // loop_exit
      _
    %687 = vsyncpa [#allocation3], 1
    %s688 = scalar_lea.sflag [#allocation3], 1
    %689 = vsyncpa %s688, 1
    %690 = vsyncpa [#allocation6], 1
    %s691 = scalar_lea.sflag [#allocation6], 1
    %692 = vsyncpa %s691, 1
    %693 = vsyncpa [#allocation9], 1
    %694 = vsyncpa [#allocation4], 1
    %s695 = scalar_lea.sflag [#allocation4], 1
    %696 = vsyncpa %s695, 1

// kernel: tpu_custom_call.1
$region0: #{tpu_custom_call.1}
  #allocation0 [shape = 'u32[]', space=smem, size = 0x4, offset = 0x4, fixed_abs, tag = 'smem constant byte address 0x4 - core index']
  #allocation1 [shape = 'u32[144,128]{1,0:T(1,128)}', space=vmem, size = 0x12000, scoped, tag = 'internal scratch']
  %s0 = inlined_call_operand.hbm [shape: f32[2,9,8,24], index: 0, kind: input, shape index: {}]
  %s1 = inlined_call_operand.hbm [shape: f32[2,9,8,24], index: 1, kind: input, shape index: {}]
  %s2 = inlined_call_operand.hbm [shape: f32[24,128], index: 2, kind: input, shape index: {}]
  %s3 = inlined_call_operand.hbm [shape: f32[12,128], index: 3, kind: input, shape index: {}]
  %s4 = inlined_call_operand.vmem [shape: f32[1,128], index: 4, kind: input, shape index: {}]
  %s5 = inlined_call_operand.hbm [shape: f32[2,64,128], index: 5, kind: output, shape index: {}]
  %s6 = sld [smem:[#allocation0]]
  $region69: #{tpu_custom_call.1} parent=0
    _
  %s8 = ssub.s32 1, %s6
  %s9 = scalar_select 0, %s8, %s6
  $region1: #{tpu_custom_call.1} parent=0
    #allocation2 [shape = 'u8[32768]{0}', space=vmem, size = 0x8000, scoped, tag = 'input window, operand 0']
    #allocation3 [shape = 's32[2]{0}', space=sflag, size = 0x8, scoped, tag = 'scoped memory for tpu_custom_call.1']
    #allocation4 [shape = 's32[2]{0}', space=sflag, size = 0x8, scoped, tag = 'scoped memory for tpu_custom_call.1']
    #allocation5 [shape = 'u8[8192]{0}', space=vmem, size = 0x2000, scoped, tag = 'input window, operand 1']
    #allocation6 [shape = 's32[2]{0}', space=sflag, size = 0x8, scoped, tag = 'scoped memory for tpu_custom_call.1']
    #allocation7 [shape = 'u8[12288]{0}', space=vmem, size = 0x3000, scoped, tag = 'input window, operand 2, single buffered']
    #allocation8 [shape = 'u8[8192]{0}', space=vmem, size = 0x2000, scoped, tag = 'input window, operand 3, single buffered']
    #allocation9 [shape = 's32[1]{0}', space=sflag, size = 0x4, scoped, tag = 'scoped memory for tpu_custom_call.1']
    #allocation10 [shape = 'u8[32768]{0}', space=vmem, size = 0x8000, scoped, tag = 'output window, operand 0']
    %10 = vsyncpa [#allocation3], 0
    %s11 = scalar_lea.sflag [#allocation3], 1
    %12 = vsyncpa %s11, 0
    %13 = vsyncpa [#allocation6], 0
    %s14 = scalar_lea.sflag [#allocation6], 1
    %15 = vsyncpa %s14, 0
    %16 = vsyncpa [#allocation9], 0
    %17 = vsyncpa [#allocation4], 0
    %s18 = scalar_lea.sflag [#allocation4], 1
    %19 = vsyncpa %s18, 0
    loop: start=0, step=1, limit=6
    $region2: #{tpu_custom_call.1} parent=1 // loop_pre_header
      _
    $region3: #{tpu_custom_call.1} parent=1 // loop_header
      %s21 = sphi 0, %s25
      %p22 = scmp.ge.s32.totalorder %s21, 6
      %s28 = sphi 0, %s40
      %s29 = sphi 0, %s36
      %s30 = sphi 0, %s28
      %s31 = sphi 0, %s29
      %s32 = sphi 0, %s30
      %s33 = sphi 0, %s31
      %s45 = sphi 0, %s47
      %s48 = sphi 0, %s45
      %s49 = sphi 0, %s48
      %s65 = sphi 0, %s49
      %s77 = sphi 0, %s79
      %s80 = sphi 0, %s77
      %s81 = sphi 0, %s80
      %s97 = sphi 0, %s81
      %s101 = sphi 0, %s101
      %s103 = sphi 0, %s101
      %s104 = sphi 0, %s103
      %s118 = sphi 0, %s104
      %s122 = sphi 0, %s122
      %s124 = sphi 0, %s122
      %s125 = sphi 0, %s124
      %s139 = sphi 0, %s125
      %s143 = sphi 0, %s143
      %s145 = sphi 0, %s143
      %s146 = sphi 0, %s145
      %s160 = sphi 0, %s146
      %s168 = sphi 0, %s170
      %s171 = sphi 0, %s168
      %s172 = sphi 0, %s171
      %s188 = sphi 0, %s172
    $region4: #{tpu_custom_call.1} parent=1 // loop_header_branch
      %24 = sbr.rel (%p22) target = $region8
    $region5: #{tpu_custom_call.1} parent=1 // loop_body
      %s26 = ssub.s32 %s21, 1
      %s27 = ssub.s32 %s21, 2
      %s34 = sadd.s32 1, %s29
      %p35 = scmp.ge.s32.totalorder %s34, 2
      %s36 = scalar_select %p35, 0, %s34
      %s37 = sadd.s32 1, %s28
      %s38 = scalar_select %p35, %s37, %s28
      %p39 = scmp.ge.s32.totalorder %s38, 2
      %s40 = scalar_select %p39, 0, %s38
      %s41 = ssub.s32 %s28, %s40
      %s42 = ssub.s32 %s29, %s36
      %s43 = sor.u32 %s41, %s42
      %p44 = scmp.eq.s32.totalorder %s43, 0
      %s46 = sadd.s32 %s45, 1
      %s47 = scalar_select %p44, %s45, %s46
      %p50 = pneg %p44
      %p51 = scmp.eq.s32.totalorder %s21, 3
      %p52 = por %p50, %p51
      %p53 = scmp.ne.s32.totalorder %s45, %s48
      %p54 = scmp.eq.s32.totalorder %s21, 0
      %p55 = por %p53, %p54
      %p56 = scmp.ne.s32.totalorder %s45, %s48
      %p57 = scmp.eq.s32.totalorder %s26, 3
      %p58 = por %p56, %p57
      %p59 = scmp.ne.s32.totalorder %s48, %s49
      %p60 = scmp.eq.s32.totalorder %s26, 0
      %p61 = por %p59, %p60
      %p62 = scmp.ne.s32.totalorder %s48, %s49
      %p63 = scmp.eq.s32.totalorder %s27, 3
      %p64 = por %p62, %p63
      %p66 = scmp.ne.s32.totalorder %s49, %s65
      %p67 = scmp.eq.s32.totalorder %s27, 0
      %p68 = por %p66, %p67
      %s69 = sadd.s32 %s29, 1
      %s70 = smul.u32 %s69, 4
      %s71 = sadd.s32 %s36, 1
      %s72 = smul.u32 %s71, 4
      %s73 = ssub.s32 %s28, %s40
      %s74 = ssub.s32 %s70, %s72
      %s75 = sor.u32 %s73, %s74
      %p76 = scmp.eq.s32.totalorder %s75, 0
      %s78 = sadd.s32 %s77, 1
      %s79 = scalar_select %p76, %s77, %s78
      %p82 = pneg %p76
      %p83 = scmp.eq.s32.totalorder %s21, 3
      %p84 = por %p82, %p83
      %p85 = scmp.ne.s32.totalorder %s77, %s80
      %p86 = scmp.eq.s32.totalorder %s21, 0
      %p87 = por %p85, %p86
      %p88 = scmp.ne.s32.totalorder %s77, %s80
      %p89 = scmp.eq.s32.totalorder %s26, 3
      %p90 = por %p88, %p89
      %p91 = scmp.ne.s32.totalorder %s80, %s81
      %p92 = scmp.eq.s32.totalorder %s26, 0
      %p93 = por %p91, %p92
      %p94 = scmp.ne.s32.totalorder %s80, %s81
      %p95 = scmp.eq.s32.totalorder %s27, 3
      %p96 = por %p94, %p95
      %p98 = scmp.ne.s32.totalorder %s81, %s97
      %p99 = scmp.eq.s32.totalorder %s27, 0
      %p100 = por %p98, %p99
      %s102 = sadd.s32 %s101, 1
      %p105 = scmp.eq.s32.totalorder %s21, 3
      %p106 = scmp.ne.s32.totalorder %s101, %s103
      %p107 = scmp.eq.s32.totalorder %s21, 0
      %p108 = por %p106, %p107
      %p109 = scmp.ne.s32.totalorder %s101, %s103
      %p110 = scmp.eq.s32.totalorder %s26, 3
      %p111 = por %p109, %p110
      %p112 = scmp.ne.s32.totalorder %s103, %s104
      %p113 = scmp.eq.s32.totalorder %s26, 0
      %p114 = por %p112, %p113
      %p115 = scmp.ne.s32.totalorder %s103, %s104
      %p116 = scmp.eq.s32.totalorder %s27, 3
      %p117 = por %p115, %p116
      %p119 = scmp.ne.s32.totalorder %s104, %s118
      %p120 = scmp.eq.s32.totalorder %s27, 0
      %p121 = por %p119, %p120
      %s123 = sadd.s32 %s122, 1
      %p126 = scmp.eq.s32.totalorder %s21, 3
      %p127 = scmp.ne.s32.totalorder %s122, %s124
      %p128 = scmp.eq.s32.totalorder %s21, 0
      %p129 = por %p127, %p128
      %p130 = scmp.ne.s32.totalorder %s122, %s124
      %p131 = scmp.eq.s32.totalorder %s26, 3
      %p132 = por %p130, %p131
      %p133 = scmp.ne.s32.totalorder %s124, %s125
      %p134 = scmp.eq.s32.totalorder %s26, 0
      %p135 = por %p133, %p134
      %p136 = scmp.ne.s32.totalorder %s124, %s125
      %p137 = scmp.eq.s32.totalorder %s27, 3
      %p138 = por %p136, %p137
      %p140 = scmp.ne.s32.totalorder %s125, %s139
      %p141 = scmp.eq.s32.totalorder %s27, 0
      %p142 = por %p140, %p141
      %s144 = sadd.s32 %s143, 1
      %p147 = scmp.eq.s32.totalorder %s21, 3
      %p148 = scmp.ne.s32.totalorder %s143, %s145
      %p149 = scmp.eq.s32.totalorder %s21, 0
      %p150 = por %p148, %p149
      %p151 = scmp.ne.s32.totalorder %s143, %s145
      %p152 = scmp.eq.s32.totalorder %s26, 3
      %p153 = por %p151, %p152
      %p154 = scmp.ne.s32.totalorder %s145, %s146
      %p155 = scmp.eq.s32.totalorder %s26, 0
      %p156 = por %p154, %p155
      %p157 = scmp.ne.s32.totalorder %s145, %s146
      %p158 = scmp.eq.s32.totalorder %s27, 3
      %p159 = por %p157, %p158
      %p161 = scmp.ne.s32.totalorder %s146, %s160
      %p162 = scmp.eq.s32.totalorder %s27, 0
      %p163 = por %p161, %p162
      %s164 = ssub.s32 %s28, %s40
      %s165 = ssub.s32 %s29, %s36
      %s166 = sor.u32 %s164, %s165
      %p167 = scmp.eq.s32.totalorder %s166, 0
      %s169 = sadd.s32 %s168, 1
      %s170 = scalar_select %p167, %s168, %s169
      %p173 = pneg %p167
      %p174 = scmp.eq.s32.totalorder %s21, 3
      %p175 = por %p173, %p174
      %p176 = scmp.ne.s32.totalorder %s168, %s171
      %p177 = scmp.eq.s32.totalorder %s21, 0
      %p178 = por %p176, %p177
      %p179 = scmp.ne.s32.totalorder %s168, %s171
      %p180 = scmp.eq.s32.totalorder %s26, 3
      %p181 = por %p179, %p180
      %p182 = scmp.ne.s32.totalorder %s171, %s172
      %p183 = scmp.eq.s32.totalorder %s26, 0
      %p184 = por %p182, %p183
      %p185 = scmp.ne.s32.totalorder %s171, %s172
      %p186 = scmp.eq.s32.totalorder %s27, 3
      %p187 = por %p185, %p186
      %p189 = scmp.ne.s32.totalorder %s172, %s188
      %p190 = scmp.eq.s32.totalorder %s27, 0
      %p191 = por %p189, %p190
      %p192 = scmp.le.s32.totalorder 1, %s21
      %p193 = scmp.lt.s32.totalorder %s21, 5
      %p194 = pnand %p192, %p193
      %p195 = pneg %p194
      // Predicated region
      $region9: #{tpu_custom_call.1} parent=5 // pred_check
        _
      $region10: #{tpu_custom_call.1} parent=5 // pred_check_branch
        %197 = sbr.rel (%p194) target = $region12
      $region11: #{tpu_custom_call.1} parent=5 // pred_region
        %s198 = ssub.s32 %s21, 1
        // Predicated region
        $region13: #{tpu_custom_call.1} parent=11 // pred_check
          %p199 = pneg %p114
        $region14: #{tpu_custom_call.1} parent=11 // pred_check_branch
          %201 = sbr.rel (%p199) target = $region16
        $region15: #{tpu_custom_call.1} parent=11 // pred_region
          %s203 = ssub.s32 384, 384
          %204 = vsyncadd [#allocation6], %s203
          %s205 = sshll.u32 [#allocation7], 4
          %s206 = int_to_ptr.vmem [resolvable:$true] %s205
          %211 = dma.hbm_to_vmem [thread:$0]  %s2, 384, %s206, [#allocation6], 128, 128, 8
        $region16: #{tpu_custom_call.1} parent=11 // pred_fallthru
          _
        // Predicated region
        $region17: #{tpu_custom_call.1} parent=11 // pred_check
          %p212 = pneg %p135
        $region18: #{tpu_custom_call.1} parent=11 // pred_check_branch
          %214 = sbr.rel (%p212) target = $region20
        $region19: #{tpu_custom_call.1} parent=11 // pred_region
          %s216 = ssub.s32 256, 256
          %217 = vsyncadd [#allocation9], %s216
          %s218 = sshll.u32 [#allocation8], 4
          %s219 = int_to_ptr.vmem [resolvable:$true] %s218
          %224 = dma.hbm_to_vmem [thread:$0]  %s3, 256, %s219, [#allocation9], 128, 128, 8
        $region20: #{tpu_custom_call.1} parent=11 // pred_fallthru
          _
        // Predicated region
        $region21: #{tpu_custom_call.1} parent=11 // pred_check
          %p225 = pneg %p156
        $region22: #{tpu_custom_call.1} parent=11 // pred_check_branch
          %227 = sbr.rel (%p225) target = $region24
        $region23: #{tpu_custom_call.1} parent=11 // pred_region
          _
        $region24: #{tpu_custom_call.1} parent=11 // pred_fallthru
          _
      $region12: #{tpu_custom_call.1} parent=5 // pred_fallthru
        _
      %p228 = scmp.lt.s32.totalorder %s21, 4
      // Predicated region
      $region25: #{tpu_custom_call.1} parent=5 // pred_check
        %p229 = pneg %p228
      $region26: #{tpu_custom_call.1} parent=5 // pred_check_branch
        %231 = sbr.rel (%p229) target = $region28
      $region27: #{tpu_custom_call.1} parent=5 // pred_region
        // Predicated region
        $region29: #{tpu_custom_call.1} parent=27 // pred_check
          %p232 = pneg %p55
        $region30: #{tpu_custom_call.1} parent=27 // pred_check_branch
          %234 = sbr.rel (%p232) target = $region32
        $region31: #{tpu_custom_call.1} parent=27 // pred_region
          %s235 = sand.u32 %s45, 1
          %s236 = scalar_lea.sflag [#allocation3], %s235
          %s237 = sand.u32 %s45, 1
          %s238 = smul.addr %s237, 32
          %s239 = scalar_lea.vmem [#allocation2], %s238
          %s240 = smul.u32 4, %s29
          %s241 = ssub.s32 9, %s240
          %p242 = scmp.lt.s32.totalorder %s241, 4
          %s243 = scalar_select %p242, %s241, 4
          %s244 = smul.u32 128, %s243
          %s246 = ssub.s32 512, %s244
          %247 = vsyncadd %s236, %s246
          %p248 = scmp.ne.s32.totalorder 0, %s244
          %s249 = smul.addr %s28, 9
          %s250 = sadd.s32 %s240, %s249
          %s251 = smul.addr %s250, 128
          %s252 = scalar_lea.hbm %s0, %s251
          %s253 = smul.u32 8, %s243
          %s254 = sshll.u32 %s239, 4
          %s255 = int_to_ptr.vmem [resolvable:$true] %s254
          %s256 = sshll.u32 %s253, 4
          %260 = dma.hbm_to_vmem [thread:$0]  (%p248), %s252, %s256, %s255, %s236, 128, 128, 8
        $region32: #{tpu_custom_call.1} parent=27 // pred_fallthru
          _
        // Predicated region
        $region33: #{tpu_custom_call.1} parent=27 // pred_check
          %p261 = pneg %p87
        $region34: #{tpu_custom_call.1} parent=27 // pred_check_branch
          %263 = sbr.rel (%p261) target = $region36
        $region35: #{tpu_custom_call.1} parent=27 // pred_region
          %s264 = sand.u32 %s21, 1
          %s265 = scalar_lea.sflag [#allocation6], %s264
          %s266 = sand.u32 %s77, 1
          %s267 = smul.addr %s266, 8
          %s268 = scalar_lea.vmem [#allocation5], %s267
          %s269 = sadd.s32 %s29, 1
          %s270 = smul.u32 %s269, 4
          %s272 = ssub.s32 128, 128
          %273 = vsyncadd %s265, %s272
          %s274 = smul.addr %s28, 9
          %s275 = sadd.s32 %s270, %s274
          %s276 = smul.addr %s275, 128
          %s277 = scalar_lea.hbm %s1, %s276
          %s279 = sshll.u32 %s268, 4
          %s280 = int_to_ptr.vmem [resolvable:$true] %s279
          %282 = dma.hbm_to_vmem [thread:$0]  %s277, 128, %s280, %s265
        $region36: #{tpu_custom_call.1} parent=27 // pred_fallthru
          _
      $region28: #{tpu_custom_call.1} parent=5 // pred_fallthru
        _
      %p283 = scmp.le.s32.totalorder 1, %s21
      %p284 = scmp.lt.s32.totalorder %s21, 5
      %p285 = pnand %p283, %p284
      %p286 = pneg %p285
      // Predicated region
      $region37: #{tpu_custom_call.1} parent=5 // pred_check
        _
      $region38: #{tpu_custom_call.1} parent=5 // pred_check_branch
        %288 = sbr.rel (%p285) target = $region40
      $region39: #{tpu_custom_call.1} parent=5 // pred_region
        %s289 = ssub.s32 %s21, 1
        %s290 = sand.u32 %s48, 1
        %s291 = scalar_lea.sflag [#allocation3], %s290
        %s292 = sand.u32 %s48, 1
        %s293 = smul.addr %s292, 32
        %s294 = scalar_lea.vmem [#allocation2], %s293
        // Predicated region
        $region41: #{tpu_custom_call.1} parent=39 // pred_check
          %p295 = pneg %p61
        $region42: #{tpu_custom_call.1} parent=39 // pred_check_branch
          %297 = sbr.rel (%p295) target = $region44
        $region43: #{tpu_custom_call.1} parent=39 // pred_region
          %298 = dma.done %s291, 512
        $region44: #{tpu_custom_call.1} parent=39 // pred_fallthru
          _
        %s299 = sand.u32 %s26, 1
        %s300 = scalar_lea.sflag [#allocation6], %s299
        %s301 = sand.u32 %s80, 1
        %s302 = smul.addr %s301, 8
        %s303 = scalar_lea.vmem [#allocation5], %s302
        // Predicated region
        $region45: #{tpu_custom_call.1} parent=39 // pred_check
          %p304 = pneg %p93
        $region46: #{tpu_custom_call.1} parent=39 // pred_check_branch
          %306 = sbr.rel (%p304) target = $region48
        $region47: #{tpu_custom_call.1} parent=39 // pred_region
          %307 = dma.done %s300, 128
        $region48: #{tpu_custom_call.1} parent=39 // pred_fallthru
          _
        // Predicated region
        $region49: #{tpu_custom_call.1} parent=39 // pred_check
          %p308 = pneg %p114
        $region50: #{tpu_custom_call.1} parent=39 // pred_check_branch
          %310 = sbr.rel (%p308) target = $region52
        $region51: #{tpu_custom_call.1} parent=39 // pred_region
          %311 = dma.done [#allocation6], 384
        $region52: #{tpu_custom_call.1} parent=39 // pred_fallthru
          _
        // Predicated region
        $region53: #{tpu_custom_call.1} parent=39 // pred_check
          %p312 = pneg %p135
        $region54: #{tpu_custom_call.1} parent=39 // pred_check_branch
          %314 = sbr.rel (%p312) target = $region56
        $region55: #{tpu_custom_call.1} parent=39 // pred_region
          %315 = dma.done [#allocation9], 256
        $region56: #{tpu_custom_call.1} parent=39 // pred_fallthru
          _
        %s316 = sand.u32 %s48, 1
        %s317 = scalar_lea.sflag [#allocation3], %s316
        %s318 = sand.u32 %s48, 1
        %s319 = smul.addr %s318, 32
        %s320 = scalar_lea.vmem [#allocation2], %s319
        %p321 = pneg %p61
        %p322 = pneg %p58
        %s323 = sand.u32 %s26, 1
        %s324 = scalar_lea.sflag [#allocation6], %s323
        %s325 = sand.u32 %s80, 1
        %s326 = smul.addr %s325, 8
        %s327 = scalar_lea.vmem [#allocation5], %s326
        %p328 = pneg %p93
        %p329 = pneg %p90
        %p330 = pneg %p114
        %p331 = pneg %p111
        %p332 = pneg %p135
        %p333 = pneg %p132
        %p334 = pneg %p156
        %p335 = pneg %p153
        %p336 = pneg %p184
        %p337 = pneg %p181
        %s338 = sand.u32 %s171, 1
        %s339 = scalar_lea.sflag [#allocation4], %s338
        %s340 = sand.u32 %s171, 1
        %s341 = smul.addr %s340, 32
        %s342 = scalar_lea.vmem [#allocation10], %s341
        %s343 = smul.u32 4, %s31
        %s344 = ssub.s32 9, %s343
        %p345 = scmp.lt.s32.totalorder %s344, 4
        %s346 = scalar_select %p345, %s344, 4
        %s347 = smul.u32 128, %s346
        %s348 = sadd.s32 %s31, 1
        %s349 = smul.u32 %s348, 4
        %s350 = smul.u32 4, %s31
        %v351 = vld [vmem:[%s294] sm:$0xff]
        %v352 = vld [vmem:[%s294 + $0x8] sm:$0xff]
        %v353 = vld [vmem:[%s294 + $0x10] sm:$0xff]
        %v354 = vld [vmem:[%s294 + $0x18] sm:$0xff]
        %v355 = vld [vmem:[%s303] sm:$0xff]
        %v356 = vld [vmem:[%s4] sm:$0x1]
        %v357 = vld [vmem:[#allocation7] sm:$0xff]
        %v358 = vld [vmem:[#allocation7 + $0x8] sm:$0xff]
        %v359 = vld [vmem:[#allocation7 + $0x10] sm:$0xff]
        %vm360 = vcmask 195584
        %v362 = vsel %vm360, %v351, 0
        %v365 = vsel %vm360, %v352, 0
        %v368 = vsel %vm360, %v353, 0
        %v371 = vsel %vm360, %v354, 0
        %373 = vmatprep.subr.mxu0 0.0
        %374 = vmatpush1.msra.mxu0 %v357
        %375 = vmatprep.subr.mxu0 0.0
        %376 = vmatpush1.msra.mxu0 %v358
        %377 = vmatprep.subr.mxu0 0.0
        %378 = vmatpush1.msra.mxu0 %v359
        %379 = vmatprep.subr.mxu0 0.0
        %380 = vmatpush1.msra.mxu0 0.0
        %381 = vmatprep.subr.mxu0 0.0
        %382 = vmatpush1.msra.mxu0 0.0
        %383 = vmatprep.subr.mxu0 0.0
        %384 = vmatpush1.msra.mxu0 0.0
        %385 = vmatprep.subr.mxu0 0.0
        %386 = vmatpush1.msra.mxu0 0.0
        %387 = vmatprep.subr.mxu0 0.0
        %388 = vmatpush1.msra.mxu0 0.0
        %389 = vmatprep.subr.mxu0 0.0
        %390 = vmatpush1.msra.mxu0 0.0
        %391 = vmatprep.subr.mxu0 0.0
        %392 = vmatpush1.msra.mxu0 0.0
        %393 = vmatprep.subr.mxu0 0.0
        %394 = vmatpush1.msra.mxu0 0.0
        %395 = vmatprep.subr.mxu0 0.0
        %396 = vmatpush1.msra.mxu0 0.0
        %397 = vmatprep.subr.mxu0 0.0
        %398 = vmatpush1.msra.mxu0 0.0
        %399 = vmatprep.subr.mxu0 0.0
        %400 = vmatpush1.msra.mxu0 0.0
        %401 = vmatprep.subr.mxu0 0.0
        %402 = vmatpush1.msra.mxu0 0.0
        %403 = vmatprep.subr.mxu0 0.0
        %404 = vmatpush1.msra.mxu0 0.0
        %405 = vmatprep.subr.mxu0 0.0
        %406 = vmatpush1.msra.mxu0 0.0
        %407 = vmatprep.subr.mxu0 0.0
        %408 = vmatpush1.msra.mxu0 0.0
        %409 = vmatprep.subr.mxu0 0.0
        %410 = vmatpush1.msra.mxu0 0.0
        %411 = vmatprep.subr.mxu0 0.0
        %412 = vmatpush1.msra.mxu0 0.0
        %413 = vmatprep.subr.mxu0 0.0
        %414 = vmatpush1.msra.mxu0 0.0
        %415 = vmatprep.subr.mxu0 0.0
        %416 = vmatpush1.msra.mxu0 0.0
        %417 = vmatprep.subr.mxu0 0.0
        %418 = vmatpush1.msra.mxu0 0.0
        %419 = vmatprep.subr.mxu0 0.0
        %420 = vmatpush1.msra.mxu0 0.0
        %421 = vmatprep.subr.mxu0 0.0
        %422 = vmatpush1.msra.mxu0 0.0
        %423 = vmatprep.subr.mxu0 0.0
        %424 = vmatpush1.msra.mxu0 0.0
        %425 = vmatprep.subr.mxu0 0.0
        %426 = vmatpush1.msra.mxu0 0.0
        %427 = vmatprep.subr.mxu0 0.0
        %428 = vmatpush1.msra.mxu0 0.0
        %429 = vmatprep.subr.mxu0 0.0
        %430 = vmatpush1.msra.mxu0 0.0
        %431 = vmatprep.subr.mxu0 0.0
        %432 = vmatpush1.msra.mxu0 0.0
        %433 = vmatprep.subr.mxu0 0.0
        %434 = vmatpush1.msra.mxu0 0.0
        %435 = vmatprep.subr.mxu0 0.0
        %436 = vmatpush1.msra.mxu0 0.0
        %437 = vmatprep.mubr.f32.mxu0 0.0
        %438 = vmatmul.mubr.f32.gmra.mrb[0].mxu0 %v362
        %v439 = vpop.f32.mrb[0].mxu0
        %v440 = vadd.f32 0.0, %v439
        %v441 = vpop.f32.mrb[0].mxu0
        %442 = vmatprep.mubr.f32.mxu0 0.0
        %443 = vmatmul.mubr.f32.gmra.mrb[0].mxu0 %v365
        %v444 = vpop.f32.mrb[0].mxu0
        %v445 = vadd.f32 0.0, %v444
        %v446 = vpop.f32.mrb[0].mxu0
        %447 = vmatprep.mubr.f32.mxu0 0.0
        %448 = vmatmul.mubr.f32.gmra.mrb[0].mxu0 %v368
        %v449 = vpop.f32.mrb[0].mxu0
        %v450 = vadd.f32 0.0, %v449
        %v451 = vpop.f32.mrb[0].mxu0
        %452 = vmatprep.mubr.f32.mxu0 0.0
        %453 = vmatmul.mubr.f32.gmra.mrb[0].mxu0 %v371
        %v454 = vpop.f32.mrb[0].mxu0
        %v455 = vadd.f32 0.0, %v454
        %v456 = vpop.f32.mrb[0].mxu0
        %457 = vdwg.mxu0
        %v458 = vld [vmem:[#allocation8] sm:$0xff]
        %v459 = vld [vmem:[#allocation8 + $0x8] sm:$0xf]
        %461 = vrot.lane.b32.xlu0 %v355, 124
        %v462 = vpop.permute.xlu0 %461
        %vm463 = vcmask 97280
        %v464 = vsel %vm463, %v462, 0
        %vm466 = vcmask 1043456
        %v468 = vsel %vm466, %v459, 0
        %470 = vmatprep.subr.mxu0 0.0
        %471 = vmatpush1.msra.mxu0 %v458
        %472 = vmatprep.subr.mxu0 0.0
        %473 = vmatpush1.msra.mxu0 %v468
        %474 = vmatprep.subr.mxu0 0.0
        %475 = vmatpush1.msra.mxu0 0.0
        %476 = vmatprep.subr.mxu0 0.0
        %477 = vmatpush1.msra.mxu0 0.0
        %478 = vmatprep.subr.mxu0 0.0
        %479 = vmatpush1.msra.mxu0 0.0
        %480 = vmatprep.subr.mxu0 0.0
        %481 = vmatpush1.msra.mxu0 0.0
        %482 = vmatprep.subr.mxu0 0.0
        %483 = vmatpush1.msra.mxu0 0.0
        %484 = vmatprep.subr.mxu0 0.0
        %485 = vmatpush1.msra.mxu0 0.0
        %486 = vmatprep.subr.mxu0 0.0
        %487 = vmatpush1.msra.mxu0 0.0
        %488 = vmatprep.subr.mxu0 0.0
        %489 = vmatpush1.msra.mxu0 0.0
        %490 = vmatprep.subr.mxu0 0.0
        %491 = vmatpush1.msra.mxu0 0.0
        %492 = vmatprep.subr.mxu0 0.0
        %493 = vmatpush1.msra.mxu0 0.0
        %494 = vmatprep.subr.mxu0 0.0
        %495 = vmatpush1.msra.mxu0 0.0
        %496 = vmatprep.subr.mxu0 0.0
        %497 = vmatpush1.msra.mxu0 0.0
        %498 = vmatprep.subr.mxu0 0.0
        %499 = vmatpush1.msra.mxu0 0.0
        %500 = vmatprep.subr.mxu0 0.0
        %501 = vmatpush1.msra.mxu0 0.0
        %502 = vmatprep.subr.mxu0 0.0
        %503 = vmatpush1.msra.mxu0 0.0
        %504 = vmatprep.subr.mxu0 0.0
        %505 = vmatpush1.msra.mxu0 0.0
        %506 = vmatprep.subr.mxu0 0.0
        %507 = vmatpush1.msra.mxu0 0.0
        %508 = vmatprep.subr.mxu0 0.0
        %509 = vmatpush1.msra.mxu0 0.0
        %510 = vmatprep.subr.mxu0 0.0
        %511 = vmatpush1.msra.mxu0 0.0
        %512 = vmatprep.subr.mxu0 0.0
        %513 = vmatpush1.msra.mxu0 0.0
        %514 = vmatprep.subr.mxu0 0.0
        %515 = vmatpush1.msra.mxu0 0.0
        %516 = vmatprep.subr.mxu0 0.0
        %517 = vmatpush1.msra.mxu0 0.0
        %518 = vmatprep.subr.mxu0 0.0
        %519 = vmatpush1.msra.mxu0 0.0
        %520 = vmatprep.subr.mxu0 0.0
        %521 = vmatpush1.msra.mxu0 0.0
        %522 = vmatprep.subr.mxu0 0.0
        %523 = vmatpush1.msra.mxu0 0.0
        %524 = vmatprep.subr.mxu0 0.0
        %525 = vmatpush1.msra.mxu0 0.0
        %526 = vmatprep.subr.mxu0 0.0
        %527 = vmatpush1.msra.mxu0 0.0
        %528 = vmatprep.subr.mxu0 0.0
        %529 = vmatpush1.msra.mxu0 0.0
        %530 = vmatprep.subr.mxu0 0.0
        %531 = vmatpush1.msra.mxu0 0.0
        %532 = vmatprep.subr.mxu0 0.0
        %533 = vmatpush1.msra.mxu0 0.0
        %534 = vmatprep.mubr.f32.mxu0 0.0
        %535 = vmatmul.mubr.f32.gmra.mrb[0].mxu0 %v464
        %v536 = vpop.f32.mrb[0].mxu0
        %v537 = vadd.f32 0.0, %v536
        %v538 = vpop.f32.mrb[0].mxu0
        %539 = vdwg.mxu0
        %540 = vrot.lane.b32.xlu0 %v352, 124
        %v541 = vpop.permute.xlu0 %540
        %542 = vrot.lane.b32.xlu0 %v353, 124
        %v543 = vpop.permute.xlu0 %542
        %544 = vrot.lane.b32.xlu0 %v354, 124
        %v545 = vpop.permute.xlu0 %544
        %v546 = vsel %vm463, %v541, 0
        %v548 = vsel %vm463, %v543, 0
        %v550 = vsel %vm463, %v545, 0
        %552 = vmatprep.subr.mxu0 0.0
        %553 = vmatpush1.msra.mxu0 %v458
        %554 = vmatprep.subr.mxu0 0.0
        %555 = vmatpush1.msra.mxu0 %v468
        %556 = vmatprep.subr.mxu0 0.0
        %557 = vmatpush1.msra.mxu0 0.0
        %558 = vmatprep.subr.mxu0 0.0
        %559 = vmatpush1.msra.mxu0 0.0
        %560 = vmatprep.subr.mxu0 0.0
        %561 = vmatpush1.msra.mxu0 0.0
        %562 = vmatprep.subr.mxu0 0.0
        %563 = vmatpush1.msra.mxu0 0.0
        %564 = vmatprep.subr.mxu0 0.0
        %565 = vmatpush1.msra.mxu0 0.0
        %566 = vmatprep.subr.mxu0 0.0
        %567 = vmatpush1.msra.mxu0 0.0
        %568 = vmatprep.subr.mxu0 0.0
        %569 = vmatpush1.msra.mxu0 0.0
        %570 = vmatprep.subr.mxu0 0.0
        %571 = vmatpush1.msra.mxu0 0.0
        %572 = vmatprep.subr.mxu0 0.0
        %573 = vmatpush1.msra.mxu0 0.0
        %574 = vmatprep.subr.mxu0 0.0
        %575 = vmatpush1.msra.mxu0 0.0
        %576 = vmatprep.subr.mxu0 0.0
        %577 = vmatpush1.msra.mxu0 0.0
        %578 = vmatprep.subr.mxu0 0.0
        %579 = vmatpush1.msra.mxu0 0.0
        %580 = vmatprep.subr.mxu0 0.0
        %581 = vmatpush1.msra.mxu0 0.0
        %582 = vmatprep.subr.mxu0 0.0
        %583 = vmatpush1.msra.mxu0 0.0
        %584 = vmatprep.subr.mxu0 0.0
        %585 = vmatpush1.msra.mxu0 0.0
        %586 = vmatprep.subr.mxu0 0.0
        %587 = vmatpush1.msra.mxu0 0.0
        %588 = vmatprep.subr.mxu0 0.0
        %589 = vmatpush1.msra.mxu0 0.0
        %590 = vmatprep.subr.mxu0 0.0
        %591 = vmatpush1.msra.mxu0 0.0
        %592 = vmatprep.subr.mxu0 0.0
        %593 = vmatpush1.msra.mxu0 0.0
        %594 = vmatprep.subr.mxu0 0.0
        %595 = vmatpush1.msra.mxu0 0.0
        %596 = vmatprep.subr.mxu0 0.0
        %597 = vmatpush1.msra.mxu0 0.0
        %598 = vmatprep.subr.mxu0 0.0
        %599 = vmatpush1.msra.mxu0 0.0
        %600 = vmatprep.subr.mxu0 0.0
        %601 = vmatpush1.msra.mxu0 0.0
        %602 = vmatprep.subr.mxu0 0.0
        %603 = vmatpush1.msra.mxu0 0.0
        %604 = vmatprep.subr.mxu0 0.0
        %605 = vmatpush1.msra.mxu0 0.0
        %606 = vmatprep.subr.mxu0 0.0
        %607 = vmatpush1.msra.mxu0 0.0
        %608 = vmatprep.subr.mxu0 0.0
        %609 = vmatpush1.msra.mxu0 0.0
        %610 = vmatprep.subr.mxu0 0.0
        %611 = vmatpush1.msra.mxu0 0.0
        %612 = vmatprep.subr.mxu0 0.0
        %613 = vmatpush1.msra.mxu0 0.0
        %614 = vmatprep.subr.mxu0 0.0
        %615 = vmatpush1.msra.mxu0 0.0
        %616 = vmatprep.mubr.f32.mxu0 0.0
        %617 = vmatmul.mubr.f32.gmra.mrb[0].mxu0 %v546
        %v618 = vpop.f32.mrb[0].mxu0
        %v619 = vadd.f32 0.0, %v618
        %v620 = vpop.f32.mrb[0].mxu0
        %621 = vmatprep.mubr.f32.mxu0 0.0
        %622 = vmatmul.mubr.f32.gmra.mrb[0].mxu0 %v548
        %v623 = vpop.f32.mrb[0].mxu0
        %v624 = vadd.f32 0.0, %v623
        %v625 = vpop.f32.mrb[0].mxu0
        %626 = vmatprep.mubr.f32.mxu0 0.0
        %627 = vmatmul.mubr.f32.gmra.mrb[0].mxu0 %v550
        %v628 = vpop.f32.mrb[0].mxu0
        %v629 = vadd.f32 0.0, %v628
        %v630 = vpop.f32.mrb[0].mxu0
        %631 = vdwg.mxu0
        %v632 = vadd.f32 %v440, %v619
        %v633 = vadd.f32 %v445, %v624
        %v634 = vadd.f32 %v450, %v629
        %v636 = vlaneseq
        %v637 = vshrl.u32 %v636, 7
        %v638 = vsub.s32 0, %v637
        %v639 = vrot.slane %v356, %v638
        %v641 = vadd.f32 %v632, %v639
        %v642 = vadd.f32 %v633, %v639
        %v643 = vadd.f32 %v634, %v639
        %644 = vst [vmem:[%s342] sm:$0xff] %v641
        %645 = vst [vmem:[%s342 + $0x8] sm:$0xff] %v642
        %646 = vst [vmem:[%s342 + $0x10] sm:$0xff] %v643
        %v647 = vadd.f32 %v455, %v537
        %v648 = vadd.f32 %v647, %v639
        %649 = vst [vmem:[%s342 + $0x18] sm:$0xff] %v648
        %s650 = sand.u32 %s171, 1
        %s651 = scalar_lea.sflag [#allocation4], %s650
        %s652 = sand.u32 %s171, 1
        %s653 = smul.addr %s652, 32
        %s654 = scalar_lea.vmem [#allocation10], %s653
        // Predicated region
        $region57: #{tpu_custom_call.1} parent=39 // pred_check
          %p655 = pneg %p181
        $region58: #{tpu_custom_call.1} parent=39 // pred_check_branch
          %657 = sbr.rel (%p655) target = $region60
        $region59: #{tpu_custom_call.1} parent=39 // pred_region
          %s658 = smul.u32 4, %s31
          %s660 = ssub.s32 512, 512
          %661 = vsyncadd %s651, %s660
          %s662 = smul.addr %s30, 8
          %s663 = sadd.s32 %s658, %s662
          %s664 = smul.addr %s663, 128
          %s665 = scalar_lea.hbm %s5, %s664
          %s666 = sshll.u32 %s654, 4
          %s667 = int_to_ptr.vmem [resolvable:$true] %s666
          %672 = dma.vmem_to_hbm [thread:$0]  %s667, 512, %s665, %s651, 128, 128, 8
        $region60: #{tpu_custom_call.1} parent=39 // pred_fallthru
          _
      $region40: #{tpu_custom_call.1} parent=5 // pred_fallthru
        _
      %p673 = scmp.le.s32.totalorder 2, %s21
      // Predicated region
      $region61: #{tpu_custom_call.1} parent=5 // pred_check
        %p674 = pneg %p673
      $region62: #{tpu_custom_call.1} parent=5 // pred_check_branch
        %676 = sbr.rel (%p674) target = $region64
      $region63: #{tpu_custom_call.1} parent=5 // pred_region
        %s677 = ssub.s32 %s21, 2
        // Predicated region
        $region65: #{tpu_custom_call.1} parent=63 // pred_check
          %p678 = pneg %p187
        $region66: #{tpu_custom_call.1} parent=63 // pred_check_branch
          %680 = sbr.rel (%p678) target = $region68
        $region67: #{tpu_custom_call.1} parent=63 // pred_region
          %s681 = sand.u32 %s172, 1
          %s682 = scalar_lea.sflag [#allocation4], %s681
          %s683 = sand.u32 %s172, 1
          %s684 = smul.addr %s683, 32
          %s685 = scalar_lea.vmem [#allocation10], %s684
          %686 = dma.done %s682, 512
        $region68: #{tpu_custom_call.1} parent=63 // pred_fallthru
          _
      $region64: #{tpu_custom_call.1} parent=5 // pred_fallthru
        _
    $region6: #{tpu_custom_call.1} parent=1 // loop_footer
      %s25 = sadd.s32 1, %s21
    $region7: #{tpu_custom_call.1} parent=1 // loop_footer_branch
      %20 = sbr.rel target = $region3
    $region8: #{tpu_custom_call.1} parent=1 // loop_exit
      _
    %687 = vsyncpa [#allocation3], 1
    %s688 = scalar_lea.sflag [#allocation3], 1
    %689 = vsyncpa %s688, 1
    %690 = vsyncpa [#allocation6], 1
    %s691 = scalar_lea.sflag [#allocation6], 1
    %692 = vsyncpa %s691, 1
    %693 = vsyncpa [#allocation9], 1
    %694 = vsyncpa [#allocation4], 1
    %s695 = scalar_lea.sflag [#allocation4], 1
    %696 = vsyncpa %s695, 1

</llo_original>
